<compile_context>
chip_gen: v5e
topology: v5e:2x2
jax: 0.10.0
libtpu: 0.0.40
codegen_flags: <defaults>
</compile_context>

<pallas_src>
import functools

import jax
import jax.numpy as jnp
from jax.experimental import pallas as pl
from jax.experimental.pallas import tpu as pltpu


# ---------------------------------------------------------------------------
# helpers
# ---------------------------------------------------------------------------
def _reorder_ifgo_to_ifog(arr):
    """Reorder the last (4H) axis from PyTorch gate order [i,f,g,o] to [i,f,o,g]."""
    i, f, g, o = jnp.split(arr, 4, axis=-1)
    return jnp.concatenate([i, f, o, g], axis=-1)


def _lstm_cell(gates, c_prev, hidden):
    """Gate columns are pre-ordered [i, f, o | g]: one sigmoid slab + one tanh slab.

    `gates` / `c_prev` are f32; all elementwise math stays f32 (v5e-friendly)."""
    ifo = jax.nn.sigmoid(gates[:, : 3 * hidden])
    g = jnp.tanh(gates[:, 3 * hidden:])
    i_g = ifo[:, :hidden]
    f_g = ifo[:, hidden: 2 * hidden]
    o_g = ifo[:, 2 * hidden: 3 * hidden]
    c_new = f_g * c_prev + i_g * g
    h_new = o_g * jnp.tanh(c_new)
    return h_new, c_new


def _pick_time_chunk(T, b_pad, F, H, H4, L, O,
                     budget_bytes=40 << 20, cap=256):
    """Largest time chunk that keeps chunk-resident VMEM under `budget_bytes`."""
    Lr = max(L - 1, 1)
    weight_bytes = ((F * H4 + H * H4 + Lr * 2 * H * H4 + H * O) * 2      # bf16
                    + (H4 + Lr * H4 + O) * 4)                            # f32 biases
    fixed = (2 * weight_bytes                    # double-buffered weight inputs
             + 2 * b_pad * L * H * 4             # h/c VMEM carry
             + 2 * b_pad * O * 4)                # output (double-buffered)
    per_t = b_pad * (2 * F * 2 + H4 * 4)         # x chunk (bf16, x2) + gx scratch f32
    avail = max(budget_bytes - fixed, per_t)
    tc = int(min(T, cap, max(1, avail // per_t)))
    # Prefer a nearby divisor of T so no tail-masking is needed.
    for d in range(tc, max(tc // 2, 0), -1):
        if T % d == 0:
            return d
    return tc


# ---------------------------------------------------------------------------
# fused kernel: per-chunk input projection + multi-layer recurrence + FC head
# ---------------------------------------------------------------------------
def _fused_lstm_kernel(x_ref, wih0_ref, b0_ref, whh0_ref, w_rest_ref,
                       b_rest_ref, fcw_ref, fcb_ref, out_ref,
                       h_scr, c_scr, gx_scr,
                       *, num_layers, hidden, seq_len, padded_len):
    c_idx = pl.program_id(0)
    b_pad = h_scr.shape[0]
    tc = gx_scr.shape[0] // b_pad          # timesteps per chunk (static)
    H = hidden
    needs_mask = padded_len != seq_len     # static python bool

    @pl.when(c_idx == 0)
    def _():
        h_scr[...] = jnp.zeros_like(h_scr)
        c_scr[...] = jnp.zeros_like(c_scr)

    # Whole-chunk layer-0 input projection: one lane-dense bf16 MXU matmul,
    # f32 accumulation, result stays in VMEM (no HBM round-trip).
    gx_scr[...] = (
        jnp.dot(x_ref[...], wih0_ref[...], preferred_element_type=jnp.float32)
        + b0_ref[...]
    )

    # Hoist per-layer bias broadcasts out of the time loop (no CSE of broadcasts).
    biases = [jnp.broadcast_to(b_rest_ref[l], (b_pad, 4 * H))
              for l in range(num_layers - 1)]

    def step(t, carry):
        # ---- layer 0: precomputed x-projection + merged-f32 hh dot ----
        row0 = pl.multiple_of(t * b_pad, 8)
        gates0 = gx_scr[pl.ds(row0, b_pad), :] + jnp.dot(
            h_scr[:, :H].astype(jnp.bfloat16), whh0_ref[...],
            preferred_element_type=jnp.float32)
        h_new, c_new = _lstm_cell(gates0, c_scr[:, :H], H)
        if needs_mask:
            valid = (c_idx * tc + t) < seq_len
            h_new = jnp.where(valid, h_new, h_scr[:, :H])
            c_new = jnp.where(valid, c_new, c_scr[:, :H])
        h_scr[:, :H] = h_new
        c_scr[:, :H] = c_new

        # ---- layers 1 .. L-1: single K=2H matmul per layer ----
        for l in range(1, num_layers):
            lo = (l - 1) * H
            h_cat = h_scr[:, lo: lo + 2 * H].astype(jnp.bfloat16)  # [h_{l-1}, h_l]
            gates = (jnp.dot(h_cat, w_rest_ref[l - 1],
                             preferred_element_type=jnp.float32)
                     + biases[l - 1])
            h_new, c_new = _lstm_cell(gates, c_scr[:, l * H:(l + 1) * H], H)
            if needs_mask:
                valid = (c_idx * tc + t) < seq_len
                h_new = jnp.where(valid, h_new, h_scr[:, l * H:(l + 1) * H])
                c_new = jnp.where(valid, c_new, c_scr[:, l * H:(l + 1) * H])
            h_scr[:, l * H:(l + 1) * H] = h_new
            c_scr[:, l * H:(l + 1) * H] = c_new
        return carry

    jax.lax.fori_loop(0, tc, step, 0, unroll=(tc <= 16))

    # Only the last timestep's top-layer hidden state is consumed -> fused FC.
    @pl.when(c_idx == pl.num_programs(0) - 1)
    def _():
        h_top = h_scr[:, (num_layers - 1) * H:].astype(jnp.bfloat16)
        out_ref[...] = (
            jnp.dot(h_top, fcw_ref[...], preferred_element_type=jnp.float32)
            + fcb_ref[...]
        )


def _run_fused_lstm(x2d, wih0, b0, whh0, w_rest, b_rest, fcw, fcb,
                    *, b_pad, tc, seq_len):
    M, F = x2d.shape
    H4 = wih0.shape[1]
    H = whh0.shape[0]
    O = fcw.shape[1]
    Lm1 = w_rest.shape[0]
    L = Lm1 + 1
    if Lm1 == 0:  # keep pallas inputs non-empty for the single-layer edge case
        w_rest = jnp.zeros((1, 2 * H, H4), jnp.bfloat16)
        b_rest = jnp.zeros((1, 1, H4), jnp.float32)
    Lr = max(Lm1, 1)

    rows_per_chunk = tc * b_pad
    num_chunks = M // rows_per_chunk
    padded_len = M // b_pad

    flops = (2 * M * F * H4                      # fused input projection
             + 2 * M * H * H4                    # layer-0 hh dot
             + 2 * M * 2 * H * H4 * Lm1          # merged K=2H dots, layers >= 1
             + 2 * b_pad * H * O)                # FC head
    transcendentals = M * L * 5 * H              # 3 sigmoid + 2 tanh per unit
    bytes_accessed = int(
        x2d.size * 2
        + (wih0.size + whh0.size + w_rest.size + fcw.size) * 2
        + (b0.size + b_rest.size + fcb.size) * 4
        + b_pad * O * 4)

    kernel = functools.partial(
        _fused_lstm_kernel, num_layers=L, hidden=H,
        seq_len=seq_len, padded_len=padded_len)

    return pl.pallas_call(
        kernel,
        out_shape=jax.ShapeDtypeStruct((b_pad, O), jnp.float32),
        grid_spec=pltpu.PrefetchScalarGridSpec(
            num_scalar_prefetch=0,
            grid=(num_chunks,),
            in_specs=[
                pl.BlockSpec((rows_per_chunk, F), lambda c: (c, 0)),   # x chunk
                pl.BlockSpec((F, H4), lambda c: (0, 0)),               # W_ih0^T
                pl.BlockSpec((1, H4), lambda c: (0, 0)),               # b0
                pl.BlockSpec((H, H4), lambda c: (0, 0)),               # W_hh0^T
                pl.BlockSpec((Lr, 2 * H, H4), lambda c: (0, 0, 0)),    # [Wih;Whh]^T, l>=1
                pl.BlockSpec((Lr, 1, H4), lambda c: (0, 0, 0)),        # biases, l>=1
                pl.BlockSpec((H, O), lambda c: (0, 0)),                # fc W^T
                pl.BlockSpec((1, O), lambda c: (0, 0)),                # fc b
            ],
            out_specs=pl.BlockSpec((b_pad, O), lambda c: (0, 0)),
            scratch_shapes=[
                pltpu.VMEM((b_pad, L * H), jnp.float32),   # h carry (lane-contiguous)
                pltpu.VMEM((b_pad, L * H), jnp.float32),   # c carry
                pltpu.VMEM((rows_per_chunk, H4), jnp.float32),  # per-chunk gates0
            ],
        ),
        compiler_params=pltpu.CompilerParams(
            dimension_semantics=("arbitrary",),            # time recurrence is serial
            vmem_limit_bytes=64 * 1024 * 1024,
        ),
        cost_estimate=pl.CostEstimate(
            flops=flops, transcendentals=transcendentals,
            bytes_accessed=bytes_accessed),
    )(x2d, wih0, b0, whh0, w_rest, b_rest, fcw, fcb)


# ---------------------------------------------------------------------------
# parameters (mirrors nn.LSTM / nn.Linear shapes; gates re-ordered to [i,f,o,g])
# ---------------------------------------------------------------------------
def init_params(key, features, hidden_size, num_layers, output_size):
    H = hidden_size
    scale = 1.0 / (H ** 0.5)
    w_ih0_t, w_hh0_t, b0 = None, None, None
    w_rest, b_rest = [], []
    for layer in range(num_layers):
        in_dim = features if layer == 0 else H
        key, k1, k2, k3, k4 = jax.random.split(key, 5)
        w_ih = jax.random.uniform(k1, (4 * H, in_dim), minval=-scale,
                                  maxval=scale, dtype=jnp.float32)
        w_hh = jax.random.uniform(k2, (4 * H, H), minval=-scale,
                                  maxval=scale, dtype=jnp.float32)
        b_ih = jax.random.uniform(k3, (4 * H,), minval=-scale,
                                  maxval=scale, dtype=jnp.float32)
        b_hh = jax.random.uniform(k4, (4 * H,), minval=-scale,
                                  maxval=scale, dtype=jnp.float32)
        w_ih_t = _reorder_ifgo_to_ifog(w_ih.T)                    # (in_dim, 4H)
        w_hh_t = _reorder_ifgo_to_ifog(w_hh.T)                    # (H, 4H)
        bias = _reorder_ifgo_to_ifog((b_ih + b_hh).reshape(1, 4 * H))
        if layer == 0:
            w_ih0_t = w_ih_t.astype(jnp.bfloat16)
            w_hh0_t = w_hh_t.astype(jnp.bfloat16)
            b0 = bias
        else:
            # Stack [W_ih^T; W_hh^T] row-wise -> single K=2H recurrent matmul.
            w_rest.append(jnp.concatenate([w_ih_t, w_hh_t],
                                          axis=0).astype(jnp.bfloat16))
            b_rest.append(bias)

    key, k5, k6 = jax.random.split(key, 3)
    w_fc = jax.random.uniform(k5, (output_size, H), minval=-scale,
                              maxval=scale, dtype=jnp.float32)
    b_fc = jax.random.uniform(k6, (output_size,), minval=-scale,
                              maxval=scale, dtype=jnp.float32)

    if w_rest:
        w_rest_s = jnp.stack(w_rest, axis=0)                      # (L-1, 2H, 4H) bf16
        b_rest_s = jnp.stack(b_rest, axis=0)                      # (L-1, 1, 4H) f32
    else:
        w_rest_s = jnp.zeros((0, 2 * H, 4 * H), jnp.bfloat16)
        b_rest_s = jnp.zeros((0, 1, 4 * H), jnp.float32)

    return {
        "w_ih0_t": w_ih0_t,                                       # (F, 4H)  bf16
        "b0": b0,                                                 # (1, 4H)  f32
        "w_hh0_t": w_hh0_t,                                       # (H, 4H)  bf16
        "w_rest": w_rest_s,                                       # (L-1, 2H, 4H) bf16
        "b_rest": b_rest_s,                                       # (L-1, 1, 4H)  f32
        "fc_w_t": w_fc.T.astype(jnp.bfloat16),                    # (H, O)   bf16
        "fc_b": b_fc.reshape(1, output_size),                     # (1, O)   f32
    }


# ---------------------------------------------------------------------------
# forward wrapper (matches the PyTorch module: out = fc(lstm(x)[:, -1, :]))
# ---------------------------------------------------------------------------
@jax.jit
def lstm_forward(params, x_btf):
    B, T, F = x_btf.shape
    H4 = params["w_ih0_t"].shape[1]
    H = H4 // 4
    O = params["fc_w_t"].shape[1]
    L = params["w_rest"].shape[0] + 1

    b_pad = ((B + 7) // 8) * 8                     # f32 sublane multiple
    tc = _pick_time_chunk(T, b_pad, F, H, H4, L, O)
    T_pad = ((T + tc - 1) // tc) * tc

    x_tm = jnp.transpose(x_btf, (1, 0, 2)).astype(jnp.bfloat16)   # (T, B, F)
    if (b_pad != B) or (T_pad != T):
        x_tm = jnp.pad(x_tm, ((0, T_pad - T), (0, b_pad - B), (0, 0)))
    x2d = x_tm.reshape(T_pad * b_pad, F)           # row = t * b_pad + b

    out = _run_fused_lstm(
        x2d, params["w_ih0_t"], params["b0"], params["w_hh0_t"],
        params["w_rest"], params["b_rest"], params["fc_w_t"], params["fc_b"],
        b_pad=b_pad, tc=tc, seq_len=T)
    return out[:B]


# ---------------------------------------------------------------------------
# pure-JAX reference (same math, same [i,f,o,g] order, same bf16 dot operands)
# ---------------------------------------------------------------------------
def _reference_forward(params, x_btf):
    B, T, _ = x_btf.shape
    H4 = params["w_ih0_t"].shape[1]
    H = H4 // 4
    L = params["w_rest"].shape[0] + 1

    def d(a, w):   # bf16 operands, f32 accumulation (mirrors the kernel dots)
        return jnp.dot(a.astype(jnp.bfloat16), w,
                       preferred_element_type=jnp.float32)

    def cell(gates, c_prev):
        i = jax.nn.sigmoid(gates[:, :H])
        f = jax.nn.sigmoid(gates[:, H:2 * H])
        o = jax.nn.sigmoid(gates[:, 2 * H:3 * H])
        g = jnp.tanh(gates[:, 3 * H:])
        c_new = f * c_prev + i * g
        return o * jnp.tanh(c_new), c_new

    h = [jnp.zeros((B, H), jnp.float32) for _ in range(L)]
    c = [jnp.zeros((B, H), jnp.float32) for _ in range(L)]
    for t in range(T):
        g0 = (d(x_btf[:, t, :], params["w_ih0_t"]) + params["b0"]
              + d(h[0], params["w_hh0_t"]))
        h[0], c[0] = cell(g0, c[0])
        for l in range(1, L):
            w = params["w_rest"][l - 1]
            g = (d(h[l - 1], w[:H]) + d(h[l], w[H:])
                 + params["b_rest"][l - 1])
            h[l], c[l] = cell(g, c[l])
    return d(h[L - 1], params["fc_w_t"]) + params["fc_b"]


if __name__ == "__main__":
    # Small shapes consistent with the module's forward.
    batch, seq_length, features = 2, 8, 4
    hidden_size, num_layers, output_size = 32, 2, 4

    key = jax.random.PRNGKey(0)
    key, xkey = jax.random.split(key)
    x = jax.random.normal(xkey, (batch, seq_length, features), dtype=jnp.float32)

    params = init_params(key, features, hidden_size, num_layers, output_size)

    y = lstm_forward(params, x)
    jax.block_until_ready(y)
    assert y.shape == (batch, output_size)
    assert y.dtype == jnp.float32

    y_ref = _reference_forward(params, x)
    assert jnp.allclose(y, y_ref, atol=2e-3, rtol=2e-3), (y, y_ref)

    print("KERNEL_OK")
</pallas_src>

<mosaic_0001>
module attributes {stable_mosaic.version = 11 : i64} {
  func.func @_fused_lstm_kernel(%arg0: i32, %arg1: memref<64x4xbf16, #tpu.memory_space<vmem>>, %arg2: memref<4x128xbf16, #tpu.memory_space<vmem>>, %arg3: memref<1x128xf32, #tpu.memory_space<vmem>>, %arg4: memref<32x128xbf16, #tpu.memory_space<vmem>>, %arg5: memref<1x64x128xbf16, #tpu.memory_space<vmem>>, %arg6: memref<1x1x128xf32, #tpu.memory_space<vmem>>, %arg7: memref<32x4xbf16, #tpu.memory_space<vmem>>, %arg8: memref<1x4xf32, #tpu.memory_space<vmem>>, %arg9: memref<8x4xf32, #tpu.memory_space<vmem>>, %arg10: memref<8x64xf32, #tpu.memory_space<vmem>>, %arg11: memref<8x64xf32, #tpu.memory_space<vmem>>, %arg12: memref<64x128xf32, #tpu.memory_space<vmem>>) attributes {dimension_semantics = [#tpu.dimension_semantics<arbitrary>], iteration_bounds = array<i64: 1>, scalar_prefetch = 0 : i64, scratch_operands = 3 : i64, tpu.core_type = #tpu.core_type<tc>, window_params = [{transform_indices = @transform_0, window_bounds = array<i64: 64, 4>}, {pipeline_mode = #tpu.pipeline_mode<synchronous>, transform_indices = @transform_1, window_bounds = array<i64: 4, 128>}, {pipeline_mode = #tpu.pipeline_mode<synchronous>, transform_indices = @transform_2, window_bounds = array<i64: 1, 128>}, {pipeline_mode = #tpu.pipeline_mode<synchronous>, transform_indices = @transform_3, window_bounds = array<i64: 32, 128>}, {pipeline_mode = #tpu.pipeline_mode<synchronous>, transform_indices = @transform_4, window_bounds = array<i64: 1, 64, 128>}, {pipeline_mode = #tpu.pipeline_mode<synchronous>, transform_indices = @transform_5, window_bounds = array<i64: 1, 1, 128>}, {pipeline_mode = #tpu.pipeline_mode<synchronous>, transform_indices = @transform_6, window_bounds = array<i64: 32, 4>}, {pipeline_mode = #tpu.pipeline_mode<synchronous>, transform_indices = @transform_7, window_bounds = array<i64: 1, 4>}, {pipeline_mode = #tpu.pipeline_mode<synchronous>, transform_indices = @transform_8, window_bounds = array<i64: 8, 4>}]} {
    %c0_i32 = arith.constant 0 : i32
    %0 = arith.cmpi eq, %arg0, %c0_i32 : i32
    %1 = arith.extui %0 : i1 to i32
    %c0_i32_0 = arith.constant 0 : i32
    %2 = arith.cmpi ne, %1, %c0_i32_0 : i32
    scf.if %2 {
      %cst_229 = arith.constant 0.000000e+00 : f32
      %441 = vector.broadcast %cst_229 : f32 to vector<8x64xf32>
      %c0_230 = arith.constant 0 : index
      %c0_231 = arith.constant 0 : index
      %442 = vector.load %arg10[%c0_230, %c0_231] : memref<8x64xf32, #tpu.memory_space<vmem>>, vector<8x64xf32>
      tpu.vector_store %arg10[%c0_230, %c0_231], %441 {strides = array<i32>} : memref<8x64xf32, #tpu.memory_space<vmem>>, vector<8x64xf32>,
      %cst_232 = arith.constant 0.000000e+00 : f32
      %443 = vector.broadcast %cst_232 : f32 to vector<8x64xf32>
      %c0_233 = arith.constant 0 : index
      %c0_234 = arith.constant 0 : index
      %444 = vector.load %arg11[%c0_233, %c0_234] : memref<8x64xf32, #tpu.memory_space<vmem>>, vector<8x64xf32>
      tpu.vector_store %arg11[%c0_233, %c0_234], %443 {strides = array<i32>} : memref<8x64xf32, #tpu.memory_space<vmem>>, vector<8x64xf32>,
    } else {
    }
    %c0 = arith.constant 0 : index
    %c0_1 = arith.constant 0 : index
    %3 = vector.load %arg1[%c0, %c0_1] : memref<64x4xbf16, #tpu.memory_space<vmem>>, vector<64x4xbf16>
    %c0_2 = arith.constant 0 : index
    %c0_3 = arith.constant 0 : index
    %4 = vector.load %arg2[%c0_2, %c0_3] : memref<4x128xbf16, #tpu.memory_space<vmem>>, vector<4x128xbf16>
    %cst = arith.constant dense<0.000000e+00> : vector<64x128xf32>
    %5 = tpu.matmul %3, %4, %cst {dimension_numbers = #tpu.dot_dimension_numbers<[1], [0], [0], [1], [0, 0, 1, 1], [], []>} : vector<64x4xbf16>, vector<4x128xbf16>, vector<64x128xf32> -> vector<64x128xf32>
    %c0_4 = arith.constant 0 : index
    %c0_5 = arith.constant 0 : index
    %6 = vector.load %arg3[%c0_4, %c0_5] : memref<1x128xf32, #tpu.memory_space<vmem>>, vector<1x128xf32>
    %7 = vector.broadcast %6 : vector<1x128xf32> to vector<64x128xf32>
    %8 = arith.addf %5, %7 : vector<64x128xf32>
    %c0_6 = arith.constant 0 : index
    %c0_7 = arith.constant 0 : index
    %9 = vector.load %arg12[%c0_6, %c0_7] : memref<64x128xf32, #tpu.memory_space<vmem>>, vector<64x128xf32>
    tpu.vector_store %arg12[%c0_6, %c0_7], %8 {strides = array<i32>} : memref<64x128xf32, #tpu.memory_space<vmem>>, vector<64x128xf32>,
    %c0_8 = arith.constant 0 : index
    %c0_9 = arith.constant 0 : index
    %c0_10 = arith.constant 0 : index
    %10 = vector.load %arg6[%c0_8, %c0_9, %c0_10] : memref<1x1x128xf32, #tpu.memory_space<vmem>>, vector<1x1x128xf32>
    %11 = vector.shape_cast %10 : vector<1x1x128xf32> to vector<1x128xf32>
    %12 = vector.shape_cast %11 : vector<1x128xf32> to vector<1x128xf32>
    %13 = vector.broadcast %12 : vector<1x128xf32> to vector<8x128xf32>
    %c0_i32_11 = arith.constant 0 : i32
    %c8_i32 = arith.constant 8 : i32
    %14 = arith.muli %c0_i32_11, %c8_i32 : i32
    %15 = tpu.assume_multiple %14, 8 : i32
    %16 = arith.index_cast %15 : i32 to index
    %c0_12 = arith.constant 0 : index
    %17 = vector.load %arg12[%16, %c0_12] : memref<64x128xf32, #tpu.memory_space<vmem>>, vector<8x128xf32>
    %c0_13 = arith.constant 0 : index
    %c0_14 = arith.constant 0 : index
    %18 = vector.load %arg10[%c0_13, %c0_14] : memref<8x64xf32, #tpu.memory_space<vmem>>, vector<8x32xf32>
    %19 = arith.truncf %18 : vector<8x32xf32> to vector<8x32xbf16>
    %c0_15 = arith.constant 0 : index
    %c0_16 = arith.constant 0 : index
    %20 = vector.load %arg4[%c0_15, %c0_16] : memref<32x128xbf16, #tpu.memory_space<vmem>>, vector<32x128xbf16>
    %cst_17 = arith.constant dense<0.000000e+00> : vector<8x128xf32>
    %21 = tpu.matmul %19, %20, %cst_17 {dimension_numbers = #tpu.dot_dimension_numbers<[1], [0], [0], [1], [0, 0, 1, 1], [], []>} : vector<8x32xbf16>, vector<32x128xbf16>, vector<8x128xf32> -> vector<8x128xf32>
    %22 = arith.addf %17, %21 : vector<8x128xf32>
    %c0_18 = arith.constant 0 : index
    %c0_19 = arith.constant 0 : index
    %23 = vector.load %arg11[%c0_18, %c0_19] : memref<8x64xf32, #tpu.memory_space<vmem>>, vector<8x32xf32>
    %24 = vector.extract_strided_slice %22 {offsets = [0, 0], sizes = [8, 96], strides = [1, 1]} : vector<8x128xf32> to vector<8x96xf32>
    %25 = arith.negf %24 : vector<8x96xf32>
    %26 = math.exp %25 : vector<8x96xf32>
    %cst_20 = arith.constant 1.000000e+00 : f32
    %27 = vector.broadcast %cst_20 : f32 to vector<8x96xf32>
    %28 = arith.addf %27, %26 : vector<8x96xf32>
    %29 = arith.divf %27, %28 : vector<8x96xf32>
    %30 = vector.extract_strided_slice %22 {offsets = [0, 96], sizes = [8, 32], strides = [1, 1]} : vector<8x128xf32> to vector<8x32xf32>
    %31 = math.tanh %30 : vector<8x32xf32>
    %32 = vector.extract_strided_slice %29 {offsets = [0, 0], sizes = [8, 32], strides = [1, 1]} : vector<8x96xf32> to vector<8x32xf32>
    %33 = vector.extract_strided_slice %29 {offsets = [0, 32], sizes = [8, 32], strides = [1, 1]} : vector<8x96xf32> to vector<8x32xf32>
    %34 = vector.extract_strided_slice %29 {offsets = [0, 64], sizes = [8, 32], strides = [1, 1]} : vector<8x96xf32> to vector<8x32xf32>
    %35 = arith.mulf %33, %23 : vector<8x32xf32>
    %36 = arith.mulf %32, %31 : vector<8x32xf32>
    %37 = arith.addf %35, %36 : vector<8x32xf32>
    %38 = math.tanh %37 : vector<8x32xf32>
    %39 = arith.mulf %34, %38 : vector<8x32xf32>
    %c0_21 = arith.constant 0 : index
    %c0_22 = arith.constant 0 : index
    %40 = vector.load %arg10[%c0_21, %c0_22] : memref<8x64xf32, #tpu.memory_space<vmem>>, vector<8x32xf32>
    tpu.vector_store %arg10[%c0_21, %c0_22], %39 {strides = array<i32>} : memref<8x64xf32, #tpu.memory_space<vmem>>, vector<8x32xf32>,
    %c0_23 = arith.constant 0 : index
    %c0_24 = arith.constant 0 : index
    %41 = vector.load %arg11[%c0_23, %c0_24] : memref<8x64xf32, #tpu.memory_space<vmem>>, vector<8x32xf32>
    tpu.vector_store %arg11[%c0_23, %c0_24], %37 {strides = array<i32>} : memref<8x64xf32, #tpu.memory_space<vmem>>, vector<8x32xf32>,
    %c0_25 = arith.constant 0 : index
    %c0_26 = arith.constant 0 : index
    %42 = vector.load %arg10[%c0_25, %c0_26] : memref<8x64xf32, #tpu.memory_space<vmem>>, vector<8x64xf32>
    %43 = arith.truncf %42 : vector<8x64xf32> to vector<8x64xbf16>
    %c0_27 = arith.constant 0 : index
    %c0_28 = arith.constant 0 : index
    %c0_29 = arith.constant 0 : index
    %44 = vector.load %arg5[%c0_27, %c0_28, %c0_29] : memref<1x64x128xbf16, #tpu.memory_space<vmem>>, vector<1x64x128xbf16>
    %45 = vector.shape_cast %44 : vector<1x64x128xbf16> to vector<64x128xbf16>
    %cst_30 = arith.constant dense<0.000000e+00> : vector<8x128xf32>
    %46 = tpu.matmul %43, %45, %cst_30 {dimension_numbers = #tpu.dot_dimension_numbers<[1], [0], [0], [1], [0, 0, 1, 1], [], []>} : vector<8x64xbf16>, vector<64x128xbf16>, vector<8x128xf32> -> vector<8x128xf32>
    %47 = arith.addf %46, %13 : vector<8x128xf32>
    %c0_31 = arith.constant 0 : index
    %c32 = arith.constant 32 : index
    %48 = vector.load %arg11[%c0_31, %c32] : memref<8x64xf32, #tpu.memory_space<vmem>>, vector<8x32xf32>
    %49 = vector.extract_strided_slice %47 {offsets = [0, 0], sizes = [8, 96], strides = [1, 1]} : vector<8x128xf32> to vector<8x96xf32>
    %50 = arith.negf %49 : vector<8x96xf32>
    %51 = math.exp %50 : vector<8x96xf32>
    %cst_32 = arith.constant 1.000000e+00 : f32
    %52 = vector.broadcast %cst_32 : f32 to vector<8x96xf32>
    %53 = arith.addf %52, %51 : vector<8x96xf32>
    %54 = arith.divf %52, %53 : vector<8x96xf32>
    %55 = vector.extract_strided_slice %47 {offsets = [0, 96], sizes = [8, 32], strides = [1, 1]} : vector<8x128xf32> to vector<8x32xf32>
    %56 = math.tanh %55 : vector<8x32xf32>
    %57 = vector.extract_strided_slice %54 {offsets = [0, 0], sizes = [8, 32], strides = [1, 1]} : vector<8x96xf32> to vector<8x32xf32>
    %58 = vector.extract_strided_slice %54 {offsets = [0, 32], sizes = [8, 32], strides = [1, 1]} : vector<8x96xf32> to vector<8x32xf32>
    %59 = vector.extract_strided_slice %54 {offsets = [0, 64], sizes = [8, 32], strides = [1, 1]} : vector<8x96xf32> to vector<8x32xf32>
    %60 = arith.mulf %58, %48 : vector<8x32xf32>
    %61 = arith.mulf %57, %56 : vector<8x32xf32>
    %62 = arith.addf %60, %61 : vector<8x32xf32>
    %63 = math.tanh %62 : vector<8x32xf32>
    %64 = arith.mulf %59, %63 : vector<8x32xf32>
    %c0_33 = arith.constant 0 : index
    %c32_34 = arith.constant 32 : index
    %65 = vector.load %arg10[%c0_33, %c32_34] : memref<8x64xf32, #tpu.memory_space<vmem>>, vector<8x32xf32>
    tpu.vector_store %arg10[%c0_33, %c32_34], %64 {strides = array<i32>} : memref<8x64xf32, #tpu.memory_space<vmem>>, vector<8x32xf32>,
    %c0_35 = arith.constant 0 : index
    %c32_36 = arith.constant 32 : index
    %66 = vector.load %arg11[%c0_35, %c32_36] : memref<8x64xf32, #tpu.memory_space<vmem>>, vector<8x32xf32>
    tpu.vector_store %arg11[%c0_35, %c32_36], %62 {strides = array<i32>} : memref<8x64xf32, #tpu.memory_space<vmem>>, vector<8x32xf32>,
    %c1_i32 = arith.constant 1 : i32
    %c8_i32_37 = arith.constant 8 : i32
    %67 = arith.muli %c1_i32, %c8_i32_37 : i32
    %68 = tpu.assume_multiple %67, 8 : i32
    %69 = arith.index_cast %68 : i32 to index
    %c0_38 = arith.constant 0 : index
    %70 = vector.load %arg12[%69, %c0_38] : memref<64x128xf32, #tpu.memory_space<vmem>>, vector<8x128xf32>
    %c0_39 = arith.constant 0 : index
    %c0_40 = arith.constant 0 : index
    %71 = vector.load %arg10[%c0_39, %c0_40] : memref<8x64xf32, #tpu.memory_space<vmem>>, vector<8x32xf32>
    %72 = arith.truncf %71 : vector<8x32xf32> to vector<8x32xbf16>
    %c0_41 = arith.constant 0 : index
    %c0_42 = arith.constant 0 : index
    %73 = vector.load %arg4[%c0_41, %c0_42] : memref<32x128xbf16, #tpu.memory_space<vmem>>, vector<32x128xbf16>
    %cst_43 = arith.constant dense<0.000000e+00> : vector<8x128xf32>
    %74 = tpu.matmul %72, %73, %cst_43 {dimension_numbers = #tpu.dot_dimension_numbers<[1], [0], [0], [1], [0, 0, 1, 1], [], []>} : vector<8x32xbf16>, vector<32x128xbf16>, vector<8x128xf32> -> vector<8x128xf32>
    %75 = arith.addf %70, %74 : vector<8x128xf32>
    %c0_44 = arith.constant 0 : index
    %c0_45 = arith.constant 0 : index
    %76 = vector.load %arg11[%c0_44, %c0_45] : memref<8x64xf32, #tpu.memory_space<vmem>>, vector<8x32xf32>
    %77 = vector.extract_strided_slice %75 {offsets = [0, 0], sizes = [8, 96], strides = [1, 1]} : vector<8x128xf32> to vector<8x96xf32>
    %78 = arith.negf %77 : vector<8x96xf32>
    %79 = math.exp %78 : vector<8x96xf32>
    %cst_46 = arith.constant 1.000000e+00 : f32
    %80 = vector.broadcast %cst_46 : f32 to vector<8x96xf32>
    %81 = arith.addf %80, %79 : vector<8x96xf32>
    %82 = arith.divf %80, %81 : vector<8x96xf32>
    %83 = vector.extract_strided_slice %75 {offsets = [0, 96], sizes = [8, 32], strides = [1, 1]} : vector<8x128xf32> to vector<8x32xf32>
    %84 = math.tanh %83 : vector<8x32xf32>
    %85 = vector.extract_strided_slice %82 {offsets = [0, 0], sizes = [8, 32], strides = [1, 1]} : vector<8x96xf32> to vector<8x32xf32>
    %86 = vector.extract_strided_slice %82 {offsets = [0, 32], sizes = [8, 32], strides = [1, 1]} : vector<8x96xf32> to vector<8x32xf32>
    %87 = vector.extract_strided_slice %82 {offsets = [0, 64], sizes = [8, 32], strides = [1, 1]} : vector<8x96xf32> to vector<8x32xf32>
    %88 = arith.mulf %86, %76 : vector<8x32xf32>
    %89 = arith.mulf %85, %84 : vector<8x32xf32>
    %90 = arith.addf %88, %89 : vector<8x32xf32>
    %91 = math.tanh %90 : vector<8x32xf32>
    %92 = arith.mulf %87, %91 : vector<8x32xf32>
    %c0_47 = arith.constant 0 : index
    %c0_48 = arith.constant 0 : index
    %93 = vector.load %arg10[%c0_47, %c0_48] : memref<8x64xf32, #tpu.memory_space<vmem>>, vector<8x32xf32>
    tpu.vector_store %arg10[%c0_47, %c0_48], %92 {strides = array<i32>} : memref<8x64xf32, #tpu.memory_space<vmem>>, vector<8x32xf32>,
    %c0_49 = arith.constant 0 : index
    %c0_50 = arith.constant 0 : index
    %94 = vector.load %arg11[%c0_49, %c0_50] : memref<8x64xf32, #tpu.memory_space<vmem>>, vector<8x32xf32>
    tpu.vector_store %arg11[%c0_49, %c0_50], %90 {strides = array<i32>} : memref<8x64xf32, #tpu.memory_space<vmem>>, vector<8x32xf32>,
    %c0_51 = arith.constant 0 : index
    %c0_52 = arith.constant 0 : index
    %95 = vector.load %arg10[%c0_51, %c0_52] : memref<8x64xf32, #tpu.memory_space<vmem>>, vector<8x64xf32>
    %96 = arith.truncf %95 : vector<8x64xf32> to vector<8x64xbf16>
    %c0_53 = arith.constant 0 : index
    %c0_54 = arith.constant 0 : index
    %c0_55 = arith.constant 0 : index
    %97 = vector.load %arg5[%c0_53, %c0_54, %c0_55] : memref<1x64x128xbf16, #tpu.memory_space<vmem>>, vector<1x64x128xbf16>
    %98 = vector.shape_cast %97 : vector<1x64x128xbf16> to vector<64x128xbf16>
    %cst_56 = arith.constant dense<0.000000e+00> : vector<8x128xf32>
    %99 = tpu.matmul %96, %98, %cst_56 {dimension_numbers = #tpu.dot_dimension_numbers<[1], [0], [0], [1], [0, 0, 1, 1], [], []>} : vector<8x64xbf16>, vector<64x128xbf16>, vector<8x128xf32> -> vector<8x128xf32>
    %100 = arith.addf %99, %13 : vector<8x128xf32>
    %c0_57 = arith.constant 0 : index
    %c32_58 = arith.constant 32 : index
    %101 = vector.load %arg11[%c0_57, %c32_58] : memref<8x64xf32, #tpu.memory_space<vmem>>, vector<8x32xf32>
    %102 = vector.extract_strided_slice %100 {offsets = [0, 0], sizes = [8, 96], strides = [1, 1]} : vector<8x128xf32> to vector<8x96xf32>
    %103 = arith.negf %102 : vector<8x96xf32>
    %104 = math.exp %103 : vector<8x96xf32>
    %cst_59 = arith.constant 1.000000e+00 : f32
    %105 = vector.broadcast %cst_59 : f32 to vector<8x96xf32>
    %106 = arith.addf %105, %104 : vector<8x96xf32>
    %107 = arith.divf %105, %106 : vector<8x96xf32>
    %108 = vector.extract_strided_slice %100 {offsets = [0, 96], sizes = [8, 32], strides = [1, 1]} : vector<8x128xf32> to vector<8x32xf32>
    %109 = math.tanh %108 : vector<8x32xf32>
    %110 = vector.extract_strided_slice %107 {offsets = [0, 0], sizes = [8, 32], strides = [1, 1]} : vector<8x96xf32> to vector<8x32xf32>
    %111 = vector.extract_strided_slice %107 {offsets = [0, 32], sizes = [8, 32], strides = [1, 1]} : vector<8x96xf32> to vector<8x32xf32>
    %112 = vector.extract_strided_slice %107 {offsets = [0, 64], sizes = [8, 32], strides = [1, 1]} : vector<8x96xf32> to vector<8x32xf32>
    %113 = arith.mulf %111, %101 : vector<8x32xf32>
    %114 = arith.mulf %110, %109 : vector<8x32xf32>
    %115 = arith.addf %113, %114 : vector<8x32xf32>
    %116 = math.tanh %115 : vector<8x32xf32>
    %117 = arith.mulf %112, %116 : vector<8x32xf32>
    %c0_60 = arith.constant 0 : index
    %c32_61 = arith.constant 32 : index
    %118 = vector.load %arg10[%c0_60, %c32_61] : memref<8x64xf32, #tpu.memory_space<vmem>>, vector<8x32xf32>
    tpu.vector_store %arg10[%c0_60, %c32_61], %117 {strides = array<i32>} : memref<8x64xf32, #tpu.memory_space<vmem>>, vector<8x32xf32>,
    %c0_62 = arith.constant 0 : index
    %c32_63 = arith.constant 32 : index
    %119 = vector.load %arg11[%c0_62, %c32_63] : memref<8x64xf32, #tpu.memory_space<vmem>>, vector<8x32xf32>
    tpu.vector_store %arg11[%c0_62, %c32_63], %115 {strides = array<i32>} : memref<8x64xf32, #tpu.memory_space<vmem>>, vector<8x32xf32>,
    %c2_i32 = arith.constant 2 : i32
    %c8_i32_64 = arith.constant 8 : i32
    %120 = arith.muli %c2_i32, %c8_i32_64 : i32
    %121 = tpu.assume_multiple %120, 8 : i32
    %122 = arith.index_cast %121 : i32 to index
    %c0_65 = arith.constant 0 : index
    %123 = vector.load %arg12[%122, %c0_65] : memref<64x128xf32, #tpu.memory_space<vmem>>, vector<8x128xf32>
    %c0_66 = arith.constant 0 : index
    %c0_67 = arith.constant 0 : index
    %124 = vector.load %arg10[%c0_66, %c0_67] : memref<8x64xf32, #tpu.memory_space<vmem>>, vector<8x32xf32>
    %125 = arith.truncf %124 : vector<8x32xf32> to vector<8x32xbf16>
    %c0_68 = arith.constant 0 : index
    %c0_69 = arith.constant 0 : index
    %126 = vector.load %arg4[%c0_68, %c0_69] : memref<32x128xbf16, #tpu.memory_space<vmem>>, vector<32x128xbf16>
    %cst_70 = arith.constant dense<0.000000e+00> : vector<8x128xf32>
    %127 = tpu.matmul %125, %126, %cst_70 {dimension_numbers = #tpu.dot_dimension_numbers<[1], [0], [0], [1], [0, 0, 1, 1], [], []>} : vector<8x32xbf16>, vector<32x128xbf16>, vector<8x128xf32> -> vector<8x128xf32>
    %128 = arith.addf %123, %127 : vector<8x128xf32>
    %c0_71 = arith.constant 0 : index
    %c0_72 = arith.constant 0 : index
    %129 = vector.load %arg11[%c0_71, %c0_72] : memref<8x64xf32, #tpu.memory_space<vmem>>, vector<8x32xf32>
    %130 = vector.extract_strided_slice %128 {offsets = [0, 0], sizes = [8, 96], strides = [1, 1]} : vector<8x128xf32> to vector<8x96xf32>
    %131 = arith.negf %130 : vector<8x96xf32>
    %132 = math.exp %131 : vector<8x96xf32>
    %cst_73 = arith.constant 1.000000e+00 : f32
    %133 = vector.broadcast %cst_73 : f32 to vector<8x96xf32>
    %134 = arith.addf %133, %132 : vector<8x96xf32>
    %135 = arith.divf %133, %134 : vector<8x96xf32>
    %136 = vector.extract_strided_slice %128 {offsets = [0, 96], sizes = [8, 32], strides = [1, 1]} : vector<8x128xf32> to vector<8x32xf32>
    %137 = math.tanh %136 : vector<8x32xf32>
    %138 = vector.extract_strided_slice %135 {offsets = [0, 0], sizes = [8, 32], strides = [1, 1]} : vector<8x96xf32> to vector<8x32xf32>
    %139 = vector.extract_strided_slice %135 {offsets = [0, 32], sizes = [8, 32], strides = [1, 1]} : vector<8x96xf32> to vector<8x32xf32>
    %140 = vector.extract_strided_slice %135 {offsets = [0, 64], sizes = [8, 32], strides = [1, 1]} : vector<8x96xf32> to vector<8x32xf32>
    %141 = arith.mulf %139, %129 : vector<8x32xf32>
    %142 = arith.mulf %138, %137 : vector<8x32xf32>
    %143 = arith.addf %141, %142 : vector<8x32xf32>
    %144 = math.tanh %143 : vector<8x32xf32>
    %145 = arith.mulf %140, %144 : vector<8x32xf32>
    %c0_74 = arith.constant 0 : index
    %c0_75 = arith.constant 0 : index
    %146 = vector.load %arg10[%c0_74, %c0_75] : memref<8x64xf32, #tpu.memory_space<vmem>>, vector<8x32xf32>
    tpu.vector_store %arg10[%c0_74, %c0_75], %145 {strides = array<i32>} : memref<8x64xf32, #tpu.memory_space<vmem>>, vector<8x32xf32>,
    %c0_76 = arith.constant 0 : index
    %c0_77 = arith.constant 0 : index
    %147 = vector.load %arg11[%c0_76, %c0_77] : memref<8x64xf32, #tpu.memory_space<vmem>>, vector<8x32xf32>
    tpu.vector_store %arg11[%c0_76, %c0_77], %143 {strides = array<i32>} : memref<8x64xf32, #tpu.memory_space<vmem>>, vector<8x32xf32>,
    %c0_78 = arith.constant 0 : index
    %c0_79 = arith.constant 0 : index
    %148 = vector.load %arg10[%c0_78, %c0_79] : memref<8x64xf32, #tpu.memory_space<vmem>>, vector<8x64xf32>
    %149 = arith.truncf %148 : vector<8x64xf32> to vector<8x64xbf16>
    %c0_80 = arith.constant 0 : index
    %c0_81 = arith.constant 0 : index
    %c0_82 = arith.constant 0 : index
    %150 = vector.load %arg5[%c0_80, %c0_81, %c0_82] : memref<1x64x128xbf16, #tpu.memory_space<vmem>>, vector<1x64x128xbf16>
    %151 = vector.shape_cast %150 : vector<1x64x128xbf16> to vector<64x128xbf16>
    %cst_83 = arith.constant dense<0.000000e+00> : vector<8x128xf32>
    %152 = tpu.matmul %149, %151, %cst_83 {dimension_numbers = #tpu.dot_dimension_numbers<[1], [0], [0], [1], [0, 0, 1, 1], [], []>} : vector<8x64xbf16>, vector<64x128xbf16>, vector<8x128xf32> -> vector<8x128xf32>
    %153 = arith.addf %152, %13 : vector<8x128xf32>
    %c0_84 = arith.constant 0 : index
    %c32_85 = arith.constant 32 : index
    %154 = vector.load %arg11[%c0_84, %c32_85] : memref<8x64xf32, #tpu.memory_space<vmem>>, vector<8x32xf32>
    %155 = vector.extract_strided_slice %153 {offsets = [0, 0], sizes = [8, 96], strides = [1, 1]} : vector<8x128xf32> to vector<8x96xf32>
    %156 = arith.negf %155 : vector<8x96xf32>
    %157 = math.exp %156 : vector<8x96xf32>
    %cst_86 = arith.constant 1.000000e+00 : f32
    %158 = vector.broadcast %cst_86 : f32 to vector<8x96xf32>
    %159 = arith.addf %158, %157 : vector<8x96xf32>
    %160 = arith.divf %158, %159 : vector<8x96xf32>
    %161 = vector.extract_strided_slice %153 {offsets = [0, 96], sizes = [8, 32], strides = [1, 1]} : vector<8x128xf32> to vector<8x32xf32>
    %162 = math.tanh %161 : vector<8x32xf32>
    %163 = vector.extract_strided_slice %160 {offsets = [0, 0], sizes = [8, 32], strides = [1, 1]} : vector<8x96xf32> to vector<8x32xf32>
    %164 = vector.extract_strided_slice %160 {offsets = [0, 32], sizes = [8, 32], strides = [1, 1]} : vector<8x96xf32> to vector<8x32xf32>
    %165 = vector.extract_strided_slice %160 {offsets = [0, 64], sizes = [8, 32], strides = [1, 1]} : vector<8x96xf32> to vector<8x32xf32>
    %166 = arith.mulf %164, %154 : vector<8x32xf32>
    %167 = arith.mulf %163, %162 : vector<8x32xf32>
    %168 = arith.addf %166, %167 : vector<8x32xf32>
    %169 = math.tanh %168 : vector<8x32xf32>
    %170 = arith.mulf %165, %169 : vector<8x32xf32>
    %c0_87 = arith.constant 0 : index
    %c32_88 = arith.constant 32 : index
    %171 = vector.load %arg10[%c0_87, %c32_88] : memref<8x64xf32, #tpu.memory_space<vmem>>, vector<8x32xf32>
    tpu.vector_store %arg10[%c0_87, %c32_88], %170 {strides = array<i32>} : memref<8x64xf32, #tpu.memory_space<vmem>>, vector<8x32xf32>,
    %c0_89 = arith.constant 0 : index
    %c32_90 = arith.constant 32 : index
    %172 = vector.load %arg11[%c0_89, %c32_90] : memref<8x64xf32, #tpu.memory_space<vmem>>, vector<8x32xf32>
    tpu.vector_store %arg11[%c0_89, %c32_90], %168 {strides = array<i32>} : memref<8x64xf32, #tpu.memory_space<vmem>>, vector<8x32xf32>,
    %c3_i32 = arith.constant 3 : i32
    %c8_i32_91 = arith.constant 8 : i32
    %173 = arith.muli %c3_i32, %c8_i32_91 : i32
    %174 = tpu.assume_multiple %173, 8 : i32
    %175 = arith.index_cast %174 : i32 to index
    %c0_92 = arith.constant 0 : index
    %176 = vector.load %arg12[%175, %c0_92] : memref<64x128xf32, #tpu.memory_space<vmem>>, vector<8x128xf32>
    %c0_93 = arith.constant 0 : index
    %c0_94 = arith.constant 0 : index
    %177 = vector.load %arg10[%c0_93, %c0_94] : memref<8x64xf32, #tpu.memory_space<vmem>>, vector<8x32xf32>
    %178 = arith.truncf %177 : vector<8x32xf32> to vector<8x32xbf16>
    %c0_95 = arith.constant 0 : index
    %c0_96 = arith.constant 0 : index
    %179 = vector.load %arg4[%c0_95, %c0_96] : memref<32x128xbf16, #tpu.memory_space<vmem>>, vector<32x128xbf16>
    %cst_97 = arith.constant dense<0.000000e+00> : vector<8x128xf32>
    %180 = tpu.matmul %178, %179, %cst_97 {dimension_numbers = #tpu.dot_dimension_numbers<[1], [0], [0], [1], [0, 0, 1, 1], [], []>} : vector<8x32xbf16>, vector<32x128xbf16>, vector<8x128xf32> -> vector<8x128xf32>
    %181 = arith.addf %176, %180 : vector<8x128xf32>
    %c0_98 = arith.constant 0 : index
    %c0_99 = arith.constant 0 : index
    %182 = vector.load %arg11[%c0_98, %c0_99] : memref<8x64xf32, #tpu.memory_space<vmem>>, vector<8x32xf32>
    %183 = vector.extract_strided_slice %181 {offsets = [0, 0], sizes = [8, 96], strides = [1, 1]} : vector<8x128xf32> to vector<8x96xf32>
    %184 = arith.negf %183 : vector<8x96xf32>
    %185 = math.exp %184 : vector<8x96xf32>
    %cst_100 = arith.constant 1.000000e+00 : f32
    %186 = vector.broadcast %cst_100 : f32 to vector<8x96xf32>
    %187 = arith.addf %186, %185 : vector<8x96xf32>
    %188 = arith.divf %186, %187 : vector<8x96xf32>
    %189 = vector.extract_strided_slice %181 {offsets = [0, 96], sizes = [8, 32], strides = [1, 1]} : vector<8x128xf32> to vector<8x32xf32>
    %190 = math.tanh %189 : vector<8x32xf32>
    %191 = vector.extract_strided_slice %188 {offsets = [0, 0], sizes = [8, 32], strides = [1, 1]} : vector<8x96xf32> to vector<8x32xf32>
    %192 = vector.extract_strided_slice %188 {offsets = [0, 32], sizes = [8, 32], strides = [1, 1]} : vector<8x96xf32> to vector<8x32xf32>
    %193 = vector.extract_strided_slice %188 {offsets = [0, 64], sizes = [8, 32], strides = [1, 1]} : vector<8x96xf32> to vector<8x32xf32>
    %194 = arith.mulf %192, %182 : vector<8x32xf32>
    %195 = arith.mulf %191, %190 : vector<8x32xf32>
    %196 = arith.addf %194, %195 : vector<8x32xf32>
    %197 = math.tanh %196 : vector<8x32xf32>
    %198 = arith.mulf %193, %197 : vector<8x32xf32>
    %c0_101 = arith.constant 0 : index
    %c0_102 = arith.constant 0 : index
    %199 = vector.load %arg10[%c0_101, %c0_102] : memref<8x64xf32, #tpu.memory_space<vmem>>, vector<8x32xf32>
    tpu.vector_store %arg10[%c0_101, %c0_102], %198 {strides = array<i32>} : memref<8x64xf32, #tpu.memory_space<vmem>>, vector<8x32xf32>,
    %c0_103 = arith.constant 0 : index
    %c0_104 = arith.constant 0 : index
    %200 = vector.load %arg11[%c0_103, %c0_104] : memref<8x64xf32, #tpu.memory_space<vmem>>, vector<8x32xf32>
    tpu.vector_store %arg11[%c0_103, %c0_104], %196 {strides = array<i32>} : memref<8x64xf32, #tpu.memory_space<vmem>>, vector<8x32xf32>,
    %c0_105 = arith.constant 0 : index
    %c0_106 = arith.constant 0 : index
    %201 = vector.load %arg10[%c0_105, %c0_106] : memref<8x64xf32, #tpu.memory_space<vmem>>, vector<8x64xf32>
    %202 = arith.truncf %201 : vector<8x64xf32> to vector<8x64xbf16>
    %c0_107 = arith.constant 0 : index
    %c0_108 = arith.constant 0 : index
    %c0_109 = arith.constant 0 : index
    %203 = vector.load %arg5[%c0_107, %c0_108, %c0_109] : memref<1x64x128xbf16, #tpu.memory_space<vmem>>, vector<1x64x128xbf16>
    %204 = vector.shape_cast %203 : vector<1x64x128xbf16> to vector<64x128xbf16>
    %cst_110 = arith.constant dense<0.000000e+00> : vector<8x128xf32>
    %205 = tpu.matmul %202, %204, %cst_110 {dimension_numbers = #tpu.dot_dimension_numbers<[1], [0], [0], [1], [0, 0, 1, 1], [], []>} : vector<8x64xbf16>, vector<64x128xbf16>, vector<8x128xf32> -> vector<8x128xf32>
    %206 = arith.addf %205, %13 : vector<8x128xf32>
    %c0_111 = arith.constant 0 : index
    %c32_112 = arith.constant 32 : index
    %207 = vector.load %arg11[%c0_111, %c32_112] : memref<8x64xf32, #tpu.memory_space<vmem>>, vector<8x32xf32>
    %208 = vector.extract_strided_slice %206 {offsets = [0, 0], sizes = [8, 96], strides = [1, 1]} : vector<8x128xf32> to vector<8x96xf32>
    %209 = arith.negf %208 : vector<8x96xf32>
    %210 = math.exp %209 : vector<8x96xf32>
    %cst_113 = arith.constant 1.000000e+00 : f32
    %211 = vector.broadcast %cst_113 : f32 to vector<8x96xf32>
    %212 = arith.addf %211, %210 : vector<8x96xf32>
    %213 = arith.divf %211, %212 : vector<8x96xf32>
    %214 = vector.extract_strided_slice %206 {offsets = [0, 96], sizes = [8, 32], strides = [1, 1]} : vector<8x128xf32> to vector<8x32xf32>
    %215 = math.tanh %214 : vector<8x32xf32>
    %216 = vector.extract_strided_slice %213 {offsets = [0, 0], sizes = [8, 32], strides = [1, 1]} : vector<8x96xf32> to vector<8x32xf32>
    %217 = vector.extract_strided_slice %213 {offsets = [0, 32], sizes = [8, 32], strides = [1, 1]} : vector<8x96xf32> to vector<8x32xf32>
    %218 = vector.extract_strided_slice %213 {offsets = [0, 64], sizes = [8, 32], strides = [1, 1]} : vector<8x96xf32> to vector<8x32xf32>
    %219 = arith.mulf %217, %207 : vector<8x32xf32>
    %220 = arith.mulf %216, %215 : vector<8x32xf32>
    %221 = arith.addf %219, %220 : vector<8x32xf32>
    %222 = math.tanh %221 : vector<8x32xf32>
    %223 = arith.mulf %218, %222 : vector<8x32xf32>
    %c0_114 = arith.constant 0 : index
    %c32_115 = arith.constant 32 : index
    %224 = vector.load %arg10[%c0_114, %c32_115] : memref<8x64xf32, #tpu.memory_space<vmem>>, vector<8x32xf32>
    tpu.vector_store %arg10[%c0_114, %c32_115], %223 {strides = array<i32>} : memref<8x64xf32, #tpu.memory_space<vmem>>, vector<8x32xf32>,
    %c0_116 = arith.constant 0 : index
    %c32_117 = arith.constant 32 : index
    %225 = vector.load %arg11[%c0_116, %c32_117] : memref<8x64xf32, #tpu.memory_space<vmem>>, vector<8x32xf32>
    tpu.vector_store %arg11[%c0_116, %c32_117], %221 {strides = array<i32>} : memref<8x64xf32, #tpu.memory_space<vmem>>, vector<8x32xf32>,
    %c4_i32 = arith.constant 4 : i32
    %c8_i32_118 = arith.constant 8 : i32
    %226 = arith.muli %c4_i32, %c8_i32_118 : i32
    %227 = tpu.assume_multiple %226, 8 : i32
    %228 = arith.index_cast %227 : i32 to index
    %c0_119 = arith.constant 0 : index
    %229 = vector.load %arg12[%228, %c0_119] : memref<64x128xf32, #tpu.memory_space<vmem>>, vector<8x128xf32>
    %c0_120 = arith.constant 0 : index
    %c0_121 = arith.constant 0 : index
    %230 = vector.load %arg10[%c0_120, %c0_121] : memref<8x64xf32, #tpu.memory_space<vmem>>, vector<8x32xf32>
    %231 = arith.truncf %230 : vector<8x32xf32> to vector<8x32xbf16>
    %c0_122 = arith.constant 0 : index
    %c0_123 = arith.constant 0 : index
    %232 = vector.load %arg4[%c0_122, %c0_123] : memref<32x128xbf16, #tpu.memory_space<vmem>>, vector<32x128xbf16>
    %cst_124 = arith.constant dense<0.000000e+00> : vector<8x128xf32>
    %233 = tpu.matmul %231, %232, %cst_124 {dimension_numbers = #tpu.dot_dimension_numbers<[1], [0], [0], [1], [0, 0, 1, 1], [], []>} : vector<8x32xbf16>, vector<32x128xbf16>, vector<8x128xf32> -> vector<8x128xf32>
    %234 = arith.addf %229, %233 : vector<8x128xf32>
    %c0_125 = arith.constant 0 : index
    %c0_126 = arith.constant 0 : index
    %235 = vector.load %arg11[%c0_125, %c0_126] : memref<8x64xf32, #tpu.memory_space<vmem>>, vector<8x32xf32>
    %236 = vector.extract_strided_slice %234 {offsets = [0, 0], sizes = [8, 96], strides = [1, 1]} : vector<8x128xf32> to vector<8x96xf32>
    %237 = arith.negf %236 : vector<8x96xf32>
    %238 = math.exp %237 : vector<8x96xf32>
    %cst_127 = arith.constant 1.000000e+00 : f32
    %239 = vector.broadcast %cst_127 : f32 to vector<8x96xf32>
    %240 = arith.addf %239, %238 : vector<8x96xf32>
    %241 = arith.divf %239, %240 : vector<8x96xf32>
    %242 = vector.extract_strided_slice %234 {offsets = [0, 96], sizes = [8, 32], strides = [1, 1]} : vector<8x128xf32> to vector<8x32xf32>
    %243 = math.tanh %242 : vector<8x32xf32>
    %244 = vector.extract_strided_slice %241 {offsets = [0, 0], sizes = [8, 32], strides = [1, 1]} : vector<8x96xf32> to vector<8x32xf32>
    %245 = vector.extract_strided_slice %241 {offsets = [0, 32], sizes = [8, 32], strides = [1, 1]} : vector<8x96xf32> to vector<8x32xf32>
    %246 = vector.extract_strided_slice %241 {offsets = [0, 64], sizes = [8, 32], strides = [1, 1]} : vector<8x96xf32> to vector<8x32xf32>
    %247 = arith.mulf %245, %235 : vector<8x32xf32>
    %248 = arith.mulf %244, %243 : vector<8x32xf32>
    %249 = arith.addf %247, %248 : vector<8x32xf32>
    %250 = math.tanh %249 : vector<8x32xf32>
    %251 = arith.mulf %246, %250 : vector<8x32xf32>
    %c0_128 = arith.constant 0 : index
    %c0_129 = arith.constant 0 : index
    %252 = vector.load %arg10[%c0_128, %c0_129] : memref<8x64xf32, #tpu.memory_space<vmem>>, vector<8x32xf32>
    tpu.vector_store %arg10[%c0_128, %c0_129], %251 {strides = array<i32>} : memref<8x64xf32, #tpu.memory_space<vmem>>, vector<8x32xf32>,
    %c0_130 = arith.constant 0 : index
    %c0_131 = arith.constant 0 : index
    %253 = vector.load %arg11[%c0_130, %c0_131] : memref<8x64xf32, #tpu.memory_space<vmem>>, vector<8x32xf32>
    tpu.vector_store %arg11[%c0_130, %c0_131], %249 {strides = array<i32>} : memref<8x64xf32, #tpu.memory_space<vmem>>, vector<8x32xf32>,
    %c0_132 = arith.constant 0 : index
    %c0_133 = arith.constant 0 : index
    %254 = vector.load %arg10[%c0_132, %c0_133] : memref<8x64xf32, #tpu.memory_space<vmem>>, vector<8x64xf32>
    %255 = arith.truncf %254 : vector<8x64xf32> to vector<8x64xbf16>
    %c0_134 = arith.constant 0 : index
    %c0_135 = arith.constant 0 : index
    %c0_136 = arith.constant 0 : index
    %256 = vector.load %arg5[%c0_134, %c0_135, %c0_136] : memref<1x64x128xbf16, #tpu.memory_space<vmem>>, vector<1x64x128xbf16>
    %257 = vector.shape_cast %256 : vector<1x64x128xbf16> to vector<64x128xbf16>
    %cst_137 = arith.constant dense<0.000000e+00> : vector<8x128xf32>
    %258 = tpu.matmul %255, %257, %cst_137 {dimension_numbers = #tpu.dot_dimension_numbers<[1], [0], [0], [1], [0, 0, 1, 1], [], []>} : vector<8x64xbf16>, vector<64x128xbf16>, vector<8x128xf32> -> vector<8x128xf32>
    %259 = arith.addf %258, %13 : vector<8x128xf32>
    %c0_138 = arith.constant 0 : index
    %c32_139 = arith.constant 32 : index
    %260 = vector.load %arg11[%c0_138, %c32_139] : memref<8x64xf32, #tpu.memory_space<vmem>>, vector<8x32xf32>
    %261 = vector.extract_strided_slice %259 {offsets = [0, 0], sizes = [8, 96], strides = [1, 1]} : vector<8x128xf32> to vector<8x96xf32>
    %262 = arith.negf %261 : vector<8x96xf32>
    %263 = math.exp %262 : vector<8x96xf32>
    %cst_140 = arith.constant 1.000000e+00 : f32
    %264 = vector.broadcast %cst_140 : f32 to vector<8x96xf32>
    %265 = arith.addf %264, %263 : vector<8x96xf32>
    %266 = arith.divf %264, %265 : vector<8x96xf32>
    %267 = vector.extract_strided_slice %259 {offsets = [0, 96], sizes = [8, 32], strides = [1, 1]} : vector<8x128xf32> to vector<8x32xf32>
    %268 = math.tanh %267 : vector<8x32xf32>
    %269 = vector.extract_strided_slice %266 {offsets = [0, 0], sizes = [8, 32], strides = [1, 1]} : vector<8x96xf32> to vector<8x32xf32>
    %270 = vector.extract_strided_slice %266 {offsets = [0, 32], sizes = [8, 32], strides = [1, 1]} : vector<8x96xf32> to vector<8x32xf32>
    %271 = vector.extract_strided_slice %266 {offsets = [0, 64], sizes = [8, 32], strides = [1, 1]} : vector<8x96xf32> to vector<8x32xf32>
    %272 = arith.mulf %270, %260 : vector<8x32xf32>
    %273 = arith.mulf %269, %268 : vector<8x32xf32>
    %274 = arith.addf %272, %273 : vector<8x32xf32>
    %275 = math.tanh %274 : vector<8x32xf32>
    %276 = arith.mulf %271, %275 : vector<8x32xf32>
    %c0_141 = arith.constant 0 : index
    %c32_142 = arith.constant 32 : index
    %277 = vector.load %arg10[%c0_141, %c32_142] : memref<8x64xf32, #tpu.memory_space<vmem>>, vector<8x32xf32>
    tpu.vector_store %arg10[%c0_141, %c32_142], %276 {strides = array<i32>} : memref<8x64xf32, #tpu.memory_space<vmem>>, vector<8x32xf32>,
    %c0_143 = arith.constant 0 : index
    %c32_144 = arith.constant 32 : index
    %278 = vector.load %arg11[%c0_143, %c32_144] : memref<8x64xf32, #tpu.memory_space<vmem>>, vector<8x32xf32>
    tpu.vector_store %arg11[%c0_143, %c32_144], %274 {strides = array<i32>} : memref<8x64xf32, #tpu.memory_space<vmem>>, vector<8x32xf32>,
    %c5_i32 = arith.constant 5 : i32
    %c8_i32_145 = arith.constant 8 : i32
    %279 = arith.muli %c5_i32, %c8_i32_145 : i32
    %280 = tpu.assume_multiple %279, 8 : i32
    %281 = arith.index_cast %280 : i32 to index
    %c0_146 = arith.constant 0 : index
    %282 = vector.load %arg12[%281, %c0_146] : memref<64x128xf32, #tpu.memory_space<vmem>>, vector<8x128xf32>
    %c0_147 = arith.constant 0 : index
    %c0_148 = arith.constant 0 : index
    %283 = vector.load %arg10[%c0_147, %c0_148] : memref<8x64xf32, #tpu.memory_space<vmem>>, vector<8x32xf32>
    %284 = arith.truncf %283 : vector<8x32xf32> to vector<8x32xbf16>
    %c0_149 = arith.constant 0 : index
    %c0_150 = arith.constant 0 : index
    %285 = vector.load %arg4[%c0_149, %c0_150] : memref<32x128xbf16, #tpu.memory_space<vmem>>, vector<32x128xbf16>
    %cst_151 = arith.constant dense<0.000000e+00> : vector<8x128xf32>
    %286 = tpu.matmul %284, %285, %cst_151 {dimension_numbers = #tpu.dot_dimension_numbers<[1], [0], [0], [1], [0, 0, 1, 1], [], []>} : vector<8x32xbf16>, vector<32x128xbf16>, vector<8x128xf32> -> vector<8x128xf32>
    %287 = arith.addf %282, %286 : vector<8x128xf32>
    %c0_152 = arith.constant 0 : index
    %c0_153 = arith.constant 0 : index
    %288 = vector.load %arg11[%c0_152, %c0_153] : memref<8x64xf32, #tpu.memory_space<vmem>>, vector<8x32xf32>
    %289 = vector.extract_strided_slice %287 {offsets = [0, 0], sizes = [8, 96], strides = [1, 1]} : vector<8x128xf32> to vector<8x96xf32>
    %290 = arith.negf %289 : vector<8x96xf32>
    %291 = math.exp %290 : vector<8x96xf32>
    %cst_154 = arith.constant 1.000000e+00 : f32
    %292 = vector.broadcast %cst_154 : f32 to vector<8x96xf32>
    %293 = arith.addf %292, %291 : vector<8x96xf32>
    %294 = arith.divf %292, %293 : vector<8x96xf32>
    %295 = vector.extract_strided_slice %287 {offsets = [0, 96], sizes = [8, 32], strides = [1, 1]} : vector<8x128xf32> to vector<8x32xf32>
    %296 = math.tanh %295 : vector<8x32xf32>
    %297 = vector.extract_strided_slice %294 {offsets = [0, 0], sizes = [8, 32], strides = [1, 1]} : vector<8x96xf32> to vector<8x32xf32>
    %298 = vector.extract_strided_slice %294 {offsets = [0, 32], sizes = [8, 32], strides = [1, 1]} : vector<8x96xf32> to vector<8x32xf32>
    %299 = vector.extract_strided_slice %294 {offsets = [0, 64], sizes = [8, 32], strides = [1, 1]} : vector<8x96xf32> to vector<8x32xf32>
    %300 = arith.mulf %298, %288 : vector<8x32xf32>
    %301 = arith.mulf %297, %296 : vector<8x32xf32>
    %302 = arith.addf %300, %301 : vector<8x32xf32>
    %303 = math.tanh %302 : vector<8x32xf32>
    %304 = arith.mulf %299, %303 : vector<8x32xf32>
    %c0_155 = arith.constant 0 : index
    %c0_156 = arith.constant 0 : index
    %305 = vector.load %arg10[%c0_155, %c0_156] : memref<8x64xf32, #tpu.memory_space<vmem>>, vector<8x32xf32>
    tpu.vector_store %arg10[%c0_155, %c0_156], %304 {strides = array<i32>} : memref<8x64xf32, #tpu.memory_space<vmem>>, vector<8x32xf32>,
    %c0_157 = arith.constant 0 : index
    %c0_158 = arith.constant 0 : index
    %306 = vector.load %arg11[%c0_157, %c0_158] : memref<8x64xf32, #tpu.memory_space<vmem>>, vector<8x32xf32>
    tpu.vector_store %arg11[%c0_157, %c0_158], %302 {strides = array<i32>} : memref<8x64xf32, #tpu.memory_space<vmem>>, vector<8x32xf32>,
    %c0_159 = arith.constant 0 : index
    %c0_160 = arith.constant 0 : index
    %307 = vector.load %arg10[%c0_159, %c0_160] : memref<8x64xf32, #tpu.memory_space<vmem>>, vector<8x64xf32>
    %308 = arith.truncf %307 : vector<8x64xf32> to vector<8x64xbf16>
    %c0_161 = arith.constant 0 : index
    %c0_162 = arith.constant 0 : index
    %c0_163 = arith.constant 0 : index
    %309 = vector.load %arg5[%c0_161, %c0_162, %c0_163] : memref<1x64x128xbf16, #tpu.memory_space<vmem>>, vector<1x64x128xbf16>
    %310 = vector.shape_cast %309 : vector<1x64x128xbf16> to vector<64x128xbf16>
    %cst_164 = arith.constant dense<0.000000e+00> : vector<8x128xf32>
    %311 = tpu.matmul %308, %310, %cst_164 {dimension_numbers = #tpu.dot_dimension_numbers<[1], [0], [0], [1], [0, 0, 1, 1], [], []>} : vector<8x64xbf16>, vector<64x128xbf16>, vector<8x128xf32> -> vector<8x128xf32>
    %312 = arith.addf %311, %13 : vector<8x128xf32>
    %c0_165 = arith.constant 0 : index
    %c32_166 = arith.constant 32 : index
    %313 = vector.load %arg11[%c0_165, %c32_166] : memref<8x64xf32, #tpu.memory_space<vmem>>, vector<8x32xf32>
    %314 = vector.extract_strided_slice %312 {offsets = [0, 0], sizes = [8, 96], strides = [1, 1]} : vector<8x128xf32> to vector<8x96xf32>
    %315 = arith.negf %314 : vector<8x96xf32>
    %316 = math.exp %315 : vector<8x96xf32>
    %cst_167 = arith.constant 1.000000e+00 : f32
    %317 = vector.broadcast %cst_167 : f32 to vector<8x96xf32>
    %318 = arith.addf %317, %316 : vector<8x96xf32>
    %319 = arith.divf %317, %318 : vector<8x96xf32>
    %320 = vector.extract_strided_slice %312 {offsets = [0, 96], sizes = [8, 32], strides = [1, 1]} : vector<8x128xf32> to vector<8x32xf32>
    %321 = math.tanh %320 : vector<8x32xf32>
    %322 = vector.extract_strided_slice %319 {offsets = [0, 0], sizes = [8, 32], strides = [1, 1]} : vector<8x96xf32> to vector<8x32xf32>
    %323 = vector.extract_strided_slice %319 {offsets = [0, 32], sizes = [8, 32], strides = [1, 1]} : vector<8x96xf32> to vector<8x32xf32>
    %324 = vector.extract_strided_slice %319 {offsets = [0, 64], sizes = [8, 32], strides = [1, 1]} : vector<8x96xf32> to vector<8x32xf32>
    %325 = arith.mulf %323, %313 : vector<8x32xf32>
    %326 = arith.mulf %322, %321 : vector<8x32xf32>
    %327 = arith.addf %325, %326 : vector<8x32xf32>
    %328 = math.tanh %327 : vector<8x32xf32>
    %329 = arith.mulf %324, %328 : vector<8x32xf32>
    %c0_168 = arith.constant 0 : index
    %c32_169 = arith.constant 32 : index
    %330 = vector.load %arg10[%c0_168, %c32_169] : memref<8x64xf32, #tpu.memory_space<vmem>>, vector<8x32xf32>
    tpu.vector_store %arg10[%c0_168, %c32_169], %329 {strides = array<i32>} : memref<8x64xf32, #tpu.memory_space<vmem>>, vector<8x32xf32>,
    %c0_170 = arith.constant 0 : index
    %c32_171 = arith.constant 32 : index
    %331 = vector.load %arg11[%c0_170, %c32_171] : memref<8x64xf32, #tpu.memory_space<vmem>>, vector<8x32xf32>
    tpu.vector_store %arg11[%c0_170, %c32_171], %327 {strides = array<i32>} : memref<8x64xf32, #tpu.memory_space<vmem>>, vector<8x32xf32>,
    %c6_i32 = arith.constant 6 : i32
    %c8_i32_172 = arith.constant 8 : i32
    %332 = arith.muli %c6_i32, %c8_i32_172 : i32
    %333 = tpu.assume_multiple %332, 8 : i32
    %334 = arith.index_cast %333 : i32 to index
    %c0_173 = arith.constant 0 : index
    %335 = vector.load %arg12[%334, %c0_173] : memref<64x128xf32, #tpu.memory_space<vmem>>, vector<8x128xf32>
    %c0_174 = arith.constant 0 : index
    %c0_175 = arith.constant 0 : index
    %336 = vector.load %arg10[%c0_174, %c0_175] : memref<8x64xf32, #tpu.memory_space<vmem>>, vector<8x32xf32>
    %337 = arith.truncf %336 : vector<8x32xf32> to vector<8x32xbf16>
    %c0_176 = arith.constant 0 : index
    %c0_177 = arith.constant 0 : index
    %338 = vector.load %arg4[%c0_176, %c0_177] : memref<32x128xbf16, #tpu.memory_space<vmem>>, vector<32x128xbf16>
    %cst_178 = arith.constant dense<0.000000e+00> : vector<8x128xf32>
    %339 = tpu.matmul %337, %338, %cst_178 {dimension_numbers = #tpu.dot_dimension_numbers<[1], [0], [0], [1], [0, 0, 1, 1], [], []>} : vector<8x32xbf16>, vector<32x128xbf16>, vector<8x128xf32> -> vector<8x128xf32>
    %340 = arith.addf %335, %339 : vector<8x128xf32>
    %c0_179 = arith.constant 0 : index
    %c0_180 = arith.constant 0 : index
    %341 = vector.load %arg11[%c0_179, %c0_180] : memref<8x64xf32, #tpu.memory_space<vmem>>, vector<8x32xf32>
    %342 = vector.extract_strided_slice %340 {offsets = [0, 0], sizes = [8, 96], strides = [1, 1]} : vector<8x128xf32> to vector<8x96xf32>
    %343 = arith.negf %342 : vector<8x96xf32>
    %344 = math.exp %343 : vector<8x96xf32>
    %cst_181 = arith.constant 1.000000e+00 : f32
    %345 = vector.broadcast %cst_181 : f32 to vector<8x96xf32>
    %346 = arith.addf %345, %344 : vector<8x96xf32>
    %347 = arith.divf %345, %346 : vector<8x96xf32>
    %348 = vector.extract_strided_slice %340 {offsets = [0, 96], sizes = [8, 32], strides = [1, 1]} : vector<8x128xf32> to vector<8x32xf32>
    %349 = math.tanh %348 : vector<8x32xf32>
    %350 = vector.extract_strided_slice %347 {offsets = [0, 0], sizes = [8, 32], strides = [1, 1]} : vector<8x96xf32> to vector<8x32xf32>
    %351 = vector.extract_strided_slice %347 {offsets = [0, 32], sizes = [8, 32], strides = [1, 1]} : vector<8x96xf32> to vector<8x32xf32>
    %352 = vector.extract_strided_slice %347 {offsets = [0, 64], sizes = [8, 32], strides = [1, 1]} : vector<8x96xf32> to vector<8x32xf32>
    %353 = arith.mulf %351, %341 : vector<8x32xf32>
    %354 = arith.mulf %350, %349 : vector<8x32xf32>
    %355 = arith.addf %353, %354 : vector<8x32xf32>
    %356 = math.tanh %355 : vector<8x32xf32>
    %357 = arith.mulf %352, %356 : vector<8x32xf32>
    %c0_182 = arith.constant 0 : index
    %c0_183 = arith.constant 0 : index
    %358 = vector.load %arg10[%c0_182, %c0_183] : memref<8x64xf32, #tpu.memory_space<vmem>>, vector<8x32xf32>
    tpu.vector_store %arg10[%c0_182, %c0_183], %357 {strides = array<i32>} : memref<8x64xf32, #tpu.memory_space<vmem>>, vector<8x32xf32>,
    %c0_184 = arith.constant 0 : index
    %c0_185 = arith.constant 0 : index
    %359 = vector.load %arg11[%c0_184, %c0_185] : memref<8x64xf32, #tpu.memory_space<vmem>>, vector<8x32xf32>
    tpu.vector_store %arg11[%c0_184, %c0_185], %355 {strides = array<i32>} : memref<8x64xf32, #tpu.memory_space<vmem>>, vector<8x32xf32>,
    %c0_186 = arith.constant 0 : index
    %c0_187 = arith.constant 0 : index
    %360 = vector.load %arg10[%c0_186, %c0_187] : memref<8x64xf32, #tpu.memory_space<vmem>>, vector<8x64xf32>
    %361 = arith.truncf %360 : vector<8x64xf32> to vector<8x64xbf16>
    %c0_188 = arith.constant 0 : index
    %c0_189 = arith.constant 0 : index
    %c0_190 = arith.constant 0 : index
    %362 = vector.load %arg5[%c0_188, %c0_189, %c0_190] : memref<1x64x128xbf16, #tpu.memory_space<vmem>>, vector<1x64x128xbf16>
    %363 = vector.shape_cast %362 : vector<1x64x128xbf16> to vector<64x128xbf16>
    %cst_191 = arith.constant dense<0.000000e+00> : vector<8x128xf32>
    %364 = tpu.matmul %361, %363, %cst_191 {dimension_numbers = #tpu.dot_dimension_numbers<[1], [0], [0], [1], [0, 0, 1, 1], [], []>} : vector<8x64xbf16>, vector<64x128xbf16>, vector<8x128xf32> -> vector<8x128xf32>
    %365 = arith.addf %364, %13 : vector<8x128xf32>
    %c0_192 = arith.constant 0 : index
    %c32_193 = arith.constant 32 : index
    %366 = vector.load %arg11[%c0_192, %c32_193] : memref<8x64xf32, #tpu.memory_space<vmem>>, vector<8x32xf32>
    %367 = vector.extract_strided_slice %365 {offsets = [0, 0], sizes = [8, 96], strides = [1, 1]} : vector<8x128xf32> to vector<8x96xf32>
    %368 = arith.negf %367 : vector<8x96xf32>
    %369 = math.exp %368 : vector<8x96xf32>
    %cst_194 = arith.constant 1.000000e+00 : f32
    %370 = vector.broadcast %cst_194 : f32 to vector<8x96xf32>
    %371 = arith.addf %370, %369 : vector<8x96xf32>
    %372 = arith.divf %370, %371 : vector<8x96xf32>
    %373 = vector.extract_strided_slice %365 {offsets = [0, 96], sizes = [8, 32], strides = [1, 1]} : vector<8x128xf32> to vector<8x32xf32>
    %374 = math.tanh %373 : vector<8x32xf32>
    %375 = vector.extract_strided_slice %372 {offsets = [0, 0], sizes = [8, 32], strides = [1, 1]} : vector<8x96xf32> to vector<8x32xf32>
    %376 = vector.extract_strided_slice %372 {offsets = [0, 32], sizes = [8, 32], strides = [1, 1]} : vector<8x96xf32> to vector<8x32xf32>
    %377 = vector.extract_strided_slice %372 {offsets = [0, 64], sizes = [8, 32], strides = [1, 1]} : vector<8x96xf32> to vector<8x32xf32>
    %378 = arith.mulf %376, %366 : vector<8x32xf32>
    %379 = arith.mulf %375, %374 : vector<8x32xf32>
    %380 = arith.addf %378, %379 : vector<8x32xf32>
    %381 = math.tanh %380 : vector<8x32xf32>
    %382 = arith.mulf %377, %381 : vector<8x32xf32>
    %c0_195 = arith.constant 0 : index
    %c32_196 = arith.constant 32 : index
    %383 = vector.load %arg10[%c0_195, %c32_196] : memref<8x64xf32, #tpu.memory_space<vmem>>, vector<8x32xf32>
    tpu.vector_store %arg10[%c0_195, %c32_196], %382 {strides = array<i32>} : memref<8x64xf32, #tpu.memory_space<vmem>>, vector<8x32xf32>,
    %c0_197 = arith.constant 0 : index
    %c32_198 = arith.constant 32 : index
    %384 = vector.load %arg11[%c0_197, %c32_198] : memref<8x64xf32, #tpu.memory_space<vmem>>, vector<8x32xf32>
    tpu.vector_store %arg11[%c0_197, %c32_198], %380 {strides = array<i32>} : memref<8x64xf32, #tpu.memory_space<vmem>>, vector<8x32xf32>,
    %c7_i32 = arith.constant 7 : i32
    %c8_i32_199 = arith.constant 8 : i32
    %385 = arith.muli %c7_i32, %c8_i32_199 : i32
    %386 = tpu.assume_multiple %385, 8 : i32
    %387 = arith.index_cast %386 : i32 to index
    %c0_200 = arith.constant 0 : index
    %388 = vector.load %arg12[%387, %c0_200] : memref<64x128xf32, #tpu.memory_space<vmem>>, vector<8x128xf32>
    %c0_201 = arith.constant 0 : index
    %c0_202 = arith.constant 0 : index
    %389 = vector.load %arg10[%c0_201, %c0_202] : memref<8x64xf32, #tpu.memory_space<vmem>>, vector<8x32xf32>
    %390 = arith.truncf %389 : vector<8x32xf32> to vector<8x32xbf16>
    %c0_203 = arith.constant 0 : index
    %c0_204 = arith.constant 0 : index
    %391 = vector.load %arg4[%c0_203, %c0_204] : memref<32x128xbf16, #tpu.memory_space<vmem>>, vector<32x128xbf16>
    %cst_205 = arith.constant dense<0.000000e+00> : vector<8x128xf32>
    %392 = tpu.matmul %390, %391, %cst_205 {dimension_numbers = #tpu.dot_dimension_numbers<[1], [0], [0], [1], [0, 0, 1, 1], [], []>} : vector<8x32xbf16>, vector<32x128xbf16>, vector<8x128xf32> -> vector<8x128xf32>
    %393 = arith.addf %388, %392 : vector<8x128xf32>
    %c0_206 = arith.constant 0 : index
    %c0_207 = arith.constant 0 : index
    %394 = vector.load %arg11[%c0_206, %c0_207] : memref<8x64xf32, #tpu.memory_space<vmem>>, vector<8x32xf32>
    %395 = vector.extract_strided_slice %393 {offsets = [0, 0], sizes = [8, 96], strides = [1, 1]} : vector<8x128xf32> to vector<8x96xf32>
    %396 = arith.negf %395 : vector<8x96xf32>
    %397 = math.exp %396 : vector<8x96xf32>
    %cst_208 = arith.constant 1.000000e+00 : f32
    %398 = vector.broadcast %cst_208 : f32 to vector<8x96xf32>
    %399 = arith.addf %398, %397 : vector<8x96xf32>
    %400 = arith.divf %398, %399 : vector<8x96xf32>
    %401 = vector.extract_strided_slice %393 {offsets = [0, 96], sizes = [8, 32], strides = [1, 1]} : vector<8x128xf32> to vector<8x32xf32>
    %402 = math.tanh %401 : vector<8x32xf32>
    %403 = vector.extract_strided_slice %400 {offsets = [0, 0], sizes = [8, 32], strides = [1, 1]} : vector<8x96xf32> to vector<8x32xf32>
    %404 = vector.extract_strided_slice %400 {offsets = [0, 32], sizes = [8, 32], strides = [1, 1]} : vector<8x96xf32> to vector<8x32xf32>
    %405 = vector.extract_strided_slice %400 {offsets = [0, 64], sizes = [8, 32], strides = [1, 1]} : vector<8x96xf32> to vector<8x32xf32>
    %406 = arith.mulf %404, %394 : vector<8x32xf32>
    %407 = arith.mulf %403, %402 : vector<8x32xf32>
    %408 = arith.addf %406, %407 : vector<8x32xf32>
    %409 = math.tanh %408 : vector<8x32xf32>
    %410 = arith.mulf %405, %409 : vector<8x32xf32>
    %c0_209 = arith.constant 0 : index
    %c0_210 = arith.constant 0 : index
    %411 = vector.load %arg10[%c0_209, %c0_210] : memref<8x64xf32, #tpu.memory_space<vmem>>, vector<8x32xf32>
    tpu.vector_store %arg10[%c0_209, %c0_210], %410 {strides = array<i32>} : memref<8x64xf32, #tpu.memory_space<vmem>>, vector<8x32xf32>,
    %c0_211 = arith.constant 0 : index
    %c0_212 = arith.constant 0 : index
    %412 = vector.load %arg11[%c0_211, %c0_212] : memref<8x64xf32, #tpu.memory_space<vmem>>, vector<8x32xf32>
    tpu.vector_store %arg11[%c0_211, %c0_212], %408 {strides = array<i32>} : memref<8x64xf32, #tpu.memory_space<vmem>>, vector<8x32xf32>,
    %c0_213 = arith.constant 0 : index
    %c0_214 = arith.constant 0 : index
    %413 = vector.load %arg10[%c0_213, %c0_214] : memref<8x64xf32, #tpu.memory_space<vmem>>, vector<8x64xf32>
    %414 = arith.truncf %413 : vector<8x64xf32> to vector<8x64xbf16>
    %c0_215 = arith.constant 0 : index
    %c0_216 = arith.constant 0 : index
    %c0_217 = arith.constant 0 : index
    %415 = vector.load %arg5[%c0_215, %c0_216, %c0_217] : memref<1x64x128xbf16, #tpu.memory_space<vmem>>, vector<1x64x128xbf16>
    %416 = vector.shape_cast %415 : vector<1x64x128xbf16> to vector<64x128xbf16>
    %cst_218 = arith.constant dense<0.000000e+00> : vector<8x128xf32>
    %417 = tpu.matmul %414, %416, %cst_218 {dimension_numbers = #tpu.dot_dimension_numbers<[1], [0], [0], [1], [0, 0, 1, 1], [], []>} : vector<8x64xbf16>, vector<64x128xbf16>, vector<8x128xf32> -> vector<8x128xf32>
    %418 = arith.addf %417, %13 : vector<8x128xf32>
    %c0_219 = arith.constant 0 : index
    %c32_220 = arith.constant 32 : index
    %419 = vector.load %arg11[%c0_219, %c32_220] : memref<8x64xf32, #tpu.memory_space<vmem>>, vector<8x32xf32>
    %420 = vector.extract_strided_slice %418 {offsets = [0, 0], sizes = [8, 96], strides = [1, 1]} : vector<8x128xf32> to vector<8x96xf32>
    %421 = arith.negf %420 : vector<8x96xf32>
    %422 = math.exp %421 : vector<8x96xf32>
    %cst_221 = arith.constant 1.000000e+00 : f32
    %423 = vector.broadcast %cst_221 : f32 to vector<8x96xf32>
    %424 = arith.addf %423, %422 : vector<8x96xf32>
    %425 = arith.divf %423, %424 : vector<8x96xf32>
    %426 = vector.extract_strided_slice %418 {offsets = [0, 96], sizes = [8, 32], strides = [1, 1]} : vector<8x128xf32> to vector<8x32xf32>
    %427 = math.tanh %426 : vector<8x32xf32>
    %428 = vector.extract_strided_slice %425 {offsets = [0, 0], sizes = [8, 32], strides = [1, 1]} : vector<8x96xf32> to vector<8x32xf32>
    %429 = vector.extract_strided_slice %425 {offsets = [0, 32], sizes = [8, 32], strides = [1, 1]} : vector<8x96xf32> to vector<8x32xf32>
    %430 = vector.extract_strided_slice %425 {offsets = [0, 64], sizes = [8, 32], strides = [1, 1]} : vector<8x96xf32> to vector<8x32xf32>
    %431 = arith.mulf %429, %419 : vector<8x32xf32>
    %432 = arith.mulf %428, %427 : vector<8x32xf32>
    %433 = arith.addf %431, %432 : vector<8x32xf32>
    %434 = math.tanh %433 : vector<8x32xf32>
    %435 = arith.mulf %430, %434 : vector<8x32xf32>
    %c0_222 = arith.constant 0 : index
    %c32_223 = arith.constant 32 : index
    %436 = vector.load %arg10[%c0_222, %c32_223] : memref<8x64xf32, #tpu.memory_space<vmem>>, vector<8x32xf32>
    tpu.vector_store %arg10[%c0_222, %c32_223], %435 {strides = array<i32>} : memref<8x64xf32, #tpu.memory_space<vmem>>, vector<8x32xf32>,
    %c0_224 = arith.constant 0 : index
    %c32_225 = arith.constant 32 : index
    %437 = vector.load %arg11[%c0_224, %c32_225] : memref<8x64xf32, #tpu.memory_space<vmem>>, vector<8x32xf32>
    tpu.vector_store %arg11[%c0_224, %c32_225], %433 {strides = array<i32>} : memref<8x64xf32, #tpu.memory_space<vmem>>, vector<8x32xf32>,
    %c8_i32_226 = arith.constant 8 : i32
    %c0_i32_227 = arith.constant 0 : i32
    %438 = arith.cmpi eq, %arg0, %c0_i32_227 : i32
    %439 = arith.extui %438 : i1 to i32
    %c0_i32_228 = arith.constant 0 : i32
    %440 = arith.cmpi ne, %439, %c0_i32_228 : i32
    scf.if %440 {
      %c0_229 = arith.constant 0 : index
      %c32_230 = arith.constant 32 : index
      %441 = vector.load %arg10[%c0_229, %c32_230] : memref<8x64xf32, #tpu.memory_space<vmem>>, vector<8x32xf32>
      %442 = arith.truncf %441 : vector<8x32xf32> to vector<8x32xbf16>
      %c0_231 = arith.constant 0 : index
      %c0_232 = arith.constant 0 : index
      %443 = vector.load %arg7[%c0_231, %c0_232] : memref<32x4xbf16, #tpu.memory_space<vmem>>, vector<32x4xbf16>
      %cst_233 = arith.constant dense<0.000000e+00> : vector<8x4xf32>
      %444 = tpu.matmul %442, %443, %cst_233 {dimension_numbers = #tpu.dot_dimension_numbers<[1], [0], [0], [1], [0, 0, 1, 1], [], []>} : vector<8x32xbf16>, vector<32x4xbf16>, vector<8x4xf32> -> vector<8x4xf32>
      %c0_234 = arith.constant 0 : index
      %c0_235 = arith.constant 0 : index
      %445 = vector.load %arg8[%c0_234, %c0_235] : memref<1x4xf32, #tpu.memory_space<vmem>>, vector<1x4xf32>
      %446 = vector.broadcast %445 : vector<1x4xf32> to vector<8x4xf32>
      %447 = arith.addf %444, %446 : vector<8x4xf32>
      %c0_236 = arith.constant 0 : index
      %c0_237 = arith.constant 0 : index
      %448 = vector.load %arg9[%c0_236, %c0_237] : memref<8x4xf32, #tpu.memory_space<vmem>>, vector<8x4xf32>
      tpu.vector_store %arg9[%c0_236, %c0_237], %447 {strides = array<i32>} : memref<8x4xf32, #tpu.memory_space<vmem>>, vector<8x4xf32>,
    } else {
    }
    return
  }
  func.func @transform_0(%arg0: i32) -> (i32, i32) {
    %c0_i32 = arith.constant 0 : i32
    %c0_i32_0 = arith.constant 0 : i32
    return %arg0, %c0_i32 : i32, i32
  }
  func.func @transform_1(%arg0: i32) -> (i32, i32) {
    %c0_i32 = arith.constant 0 : i32
    %c0_i32_0 = arith.constant 0 : i32
    %c0_i32_1 = arith.constant 0 : i32
    return %c0_i32, %c0_i32_0 : i32, i32
  }
  func.func @transform_2(%arg0: i32) -> (i32, i32) {
    %c0_i32 = arith.constant 0 : i32
    %c0_i32_0 = arith.constant 0 : i32
    %c0_i32_1 = arith.constant 0 : i32
    return %c0_i32, %c0_i32_0 : i32, i32
  }
  func.func @transform_3(%arg0: i32) -> (i32, i32) {
    %c0_i32 = arith.constant 0 : i32
    %c0_i32_0 = arith.constant 0 : i32
    %c0_i32_1 = arith.constant 0 : i32
    return %c0_i32, %c0_i32_0 : i32, i32
  }
  func.func @transform_4(%arg0: i32) -> (i32, i32, i32) {
    %c0_i32 = arith.constant 0 : i32
    %c0_i32_0 = arith.constant 0 : i32
    %c0_i32_1 = arith.constant 0 : i32
    %c0_i32_2 = arith.constant 0 : i32
    return %c0_i32, %c0_i32_0, %c0_i32_1 : i32, i32, i32
  }
  func.func @transform_5(%arg0: i32) -> (i32, i32, i32) {
    %c0_i32 = arith.constant 0 : i32
    %c0_i32_0 = arith.constant 0 : i32
    %c0_i32_1 = arith.constant 0 : i32
    %c0_i32_2 = arith.constant 0 : i32
    return %c0_i32, %c0_i32_0, %c0_i32_1 : i32, i32, i32
  }
  func.func @transform_6(%arg0: i32) -> (i32, i32) {
    %c0_i32 = arith.constant 0 : i32
    %c0_i32_0 = arith.constant 0 : i32
    %c0_i32_1 = arith.constant 0 : i32
    return %c0_i32, %c0_i32_0 : i32, i32
  }
  func.func @transform_7(%arg0: i32) -> (i32, i32) {
    %c0_i32 = arith.constant 0 : i32
    %c0_i32_0 = arith.constant 0 : i32
    %c0_i32_1 = arith.constant 0 : i32
    return %c0_i32, %c0_i32_0 : i32, i32
  }
  func.func @transform_8(%arg0: i32) -> (i32, i32) {
    %c0_i32 = arith.constant 0 : i32
    %c0_i32_0 = arith.constant 0 : i32
    %c0_i32_1 = arith.constant 0 : i32
    return %c0_i32, %c0_i32_0 : i32, i32
  }
}

</mosaic_0001>

<llo_original>
// kernel: lstm_forward.1
$region0: #{lstm_forward.1}
  #allocation0 [shape = 'u32[]', space=smem, size = 0x4, offset = 0x4, fixed_abs, tag = 'smem constant byte address 0x4 - core index']
  #allocation1 [shape = 'u32[72,128]{1,0:T(1,128)}', space=vmem, size = 0x9000, scoped, tag = 'internal scratch']
  #allocation2 [shape = 'f32[8,64]{1,0:T(8,128)}', space=vmem, size = 0x1000, scoped, tag = 'scratch operand']
  #allocation3 [shape = 'f32[8,64]{1,0:T(8,128)}', space=vmem, size = 0x1000, scoped, tag = 'scratch operand']
  #allocation4 [shape = 'f32[64,128]{1,0:T(8,128)}', space=vmem, size = 0x8000, scoped, tag = 'scratch operand']
  %s0 = inlined_call_operand.vmem [shape: bf16[64,4], index: 0, kind: input, shape index: {}]
  %s1 = inlined_call_operand.vmem [shape: bf16[4,128], index: 1, kind: input, shape index: {}]
  %s2 = inlined_call_operand.vmem [shape: f32[1,128], index: 2, kind: input, shape index: {}]
  %s3 = inlined_call_operand.vmem [shape: bf16[32,128], index: 3, kind: input, shape index: {}]
  %s4 = inlined_call_operand.vmem [shape: bf16[1,64,128], index: 4, kind: input, shape index: {}]
  %s5 = inlined_call_operand.vmem [shape: f32[1,1,128], index: 5, kind: input, shape index: {}]
  %s6 = inlined_call_operand.vmem [shape: bf16[32,4], index: 6, kind: input, shape index: {}]
  %s7 = inlined_call_operand.vmem [shape: f32[1,4], index: 7, kind: input, shape index: {}]
  %s8 = inlined_call_operand.vmem [shape: f32[8,4], index: 8, kind: output, shape index: {}]
  %s9 = sld [smem:[#allocation0]]
  $region50: #{lstm_forward.1} parent=0
    _
  %s11 = ssub.s32 1, %s9
  %s12 = scalar_select 0, %s11, %s9
  // Predicated region
  $region2: #{lstm_forward.1} parent=0 // pred_check
    _
  $region3: #{lstm_forward.1} parent=0 // pred_check_branch
    %14 = sbr.rel (0) target = $region5
  $region4: #{lstm_forward.1} parent=0 // pred_region
    _
  $region5: #{lstm_forward.1} parent=0 // pred_fallthru
    _
  // Predicated region
  $region6: #{lstm_forward.1} parent=0 // pred_check
    _
  $region7: #{lstm_forward.1} parent=0 // pred_check_branch
    %16 = sbr.rel (0) target = $region9
  $region8: #{lstm_forward.1} parent=0 // pred_region
    _
  $region9: #{lstm_forward.1} parent=0 // pred_fallthru
    _
  // Predicated region
  $region10: #{lstm_forward.1} parent=0 // pred_check
    _
  $region11: #{lstm_forward.1} parent=0 // pred_check_branch
    %18 = sbr.rel (0) target = $region13
  $region12: #{lstm_forward.1} parent=0 // pred_region
    _
  $region13: #{lstm_forward.1} parent=0 // pred_fallthru
    _
  // Predicated region
  $region14: #{lstm_forward.1} parent=0 // pred_check
    _
  $region15: #{lstm_forward.1} parent=0 // pred_check_branch
    %20 = sbr.rel (0) target = $region17
  $region16: #{lstm_forward.1} parent=0 // pred_region
    _
  $region17: #{lstm_forward.1} parent=0 // pred_fallthru
    _
  // Predicated region
  $region18: #{lstm_forward.1} parent=0 // pred_check
    _
  $region19: #{lstm_forward.1} parent=0 // pred_check_branch
    %22 = sbr.rel (0) target = $region21
  $region20: #{lstm_forward.1} parent=0 // pred_region
    _
  $region21: #{lstm_forward.1} parent=0 // pred_fallthru
    _
  // Predicated region
  $region22: #{lstm_forward.1} parent=0 // pred_check
    _
  $region23: #{lstm_forward.1} parent=0 // pred_check_branch
    %24 = sbr.rel (0) target = $region25
  $region24: #{lstm_forward.1} parent=0 // pred_region
    _
  $region25: #{lstm_forward.1} parent=0 // pred_fallthru
    _
  // Predicated region
  $region26: #{lstm_forward.1} parent=0 // pred_check
    _
  $region27: #{lstm_forward.1} parent=0 // pred_check_branch
    %26 = sbr.rel (0) target = $region29
  $region28: #{lstm_forward.1} parent=0 // pred_region
    _
  $region29: #{lstm_forward.1} parent=0 // pred_fallthru
    _
  // Predicated region
  $region30: #{lstm_forward.1} parent=0 // pred_check
    _
  $region31: #{lstm_forward.1} parent=0 // pred_check_branch
    %28 = sbr.rel (0) target = $region33
  $region32: #{lstm_forward.1} parent=0 // pred_region
    _
  $region33: #{lstm_forward.1} parent=0 // pred_fallthru
    _
  %p30 = scmp.eq.s32.totalorder 0, 0
  // Predicated region
  $region34: #{lstm_forward.1} parent=0 // pred_check
    %p31 = pneg %p30
  $region35: #{lstm_forward.1} parent=0 // pred_check_branch
    %33 = sbr.rel (%p31) target = $region37
  $region36: #{lstm_forward.1} parent=0 // pred_region
    %vm34 = vcmask 523264
    %35 = vst.msk [vmem:[#allocation2] sm:$0xff] %vm34, 0.0
    %36 = vst.msk [vmem:[#allocation3] sm:$0xff] %vm34, 0.0
  $region37: #{lstm_forward.1} parent=0 // pred_fallthru
    _
  %v37 = vld [vmem:[%s0] sm:$0xf]
  %v38 = vld [vmem:[%s0 + $0x4] sm:$0xf]
  %v39 = vld [vmem:[%s0 + $0x8] sm:$0xf]
  %v40 = vld [vmem:[%s0 + $0xc] sm:$0xf]
  %v41 = vld [vmem:[%s0 + $0x10] sm:$0xf]
  %v42 = vld [vmem:[%s0 + $0x14] sm:$0xf]
  %v43 = vld [vmem:[%s0 + $0x18] sm:$0xf]
  %v44 = vld [vmem:[%s0 + $0x1c] sm:$0xf]
  %v45 = vld [vmem:[%s1] sm:$0x3]
  %v46 = vld [vmem:[%s2] sm:$0x1]
  %v48 = vperm.slane %v46, 0
  %v58 = vunpack.c.l.b16 %v37
  %v59 = vunpack.c.l.b16 %v38
  %v60 = vunpack.c.l.b16 %v39
  %v61 = vunpack.c.l.b16 %v40
  %v62 = vunpack.c.l.b16 %v41
  %v63 = vunpack.c.l.b16 %v42
  %v64 = vunpack.c.l.b16 %v43
  %v65 = vunpack.c.l.b16 %v44
  %v66 = vpack.c.b16 %v59, %v58
  %v67 = vpack.c.b16 %v61, %v60
  %v68 = vpack.c.b16 %v63, %v62
  %v69 = vpack.c.b16 %v65, %v64
  %vm70 = vcmask 31744
  %v72 = vsel %vm70, %v66, 0
  %v75 = vsel %vm70, %v67, 0
  %v78 = vsel %vm70, %v68, 0
  %v81 = vsel %vm70, %v69, 0
  %vm83 = vcmask 1041408
  %v85 = vsel %vm83, %v45, 0
  %87 = vmatpush.bf16.msra.mxu0 0
  %88 = vmatpush.bf16.msra.mxu0 0
  %89 = vmatpush.bf16.msra.mxu0 0
  %90 = vmatpush.bf16.msra.mxu0 0
  %91 = vmatpush.bf16.msra.mxu0 0
  %92 = vmatpush.bf16.msra.mxu0 0
  %93 = vmatpush.bf16.msra.mxu0 0
  %94 = vmatpush.bf16.msra.mxu0 %v85
  %95 = vmatmul.bf16.gmra.mxu0 %v72
  %v96 = vpop.f32.mrf.mxu0
  %v97 = vadd.f32 %v48, %v96
  %v98 = vpop.f32.mrf.mxu0
  %v99 = vadd.f32 %v48, %v98
  %100 = vmatmul.bf16.gmra.mxu0 %v75
  %v101 = vpop.f32.mrf.mxu0
  %v102 = vadd.f32 %v48, %v101
  %v103 = vpop.f32.mrf.mxu0
  %v104 = vadd.f32 %v48, %v103
  %105 = vmatmul.bf16.gmra.mxu0 %v78
  %v106 = vpop.f32.mrf.mxu0
  %v107 = vadd.f32 %v48, %v106
  %v108 = vpop.f32.mrf.mxu0
  %v109 = vadd.f32 %v48, %v108
  %110 = vmatmul.bf16.gmra.mxu0 %v81
  %v111 = vpop.f32.mrf.mxu0
  %v112 = vadd.f32 %v48, %v111
  %v113 = vpop.f32.mrf.mxu0
  %v114 = vadd.f32 %v48, %v113
  %115 = vdwg.mxu0
  %116 = vst [vmem:[#allocation4] sm:$0xff] %v97
  %117 = vst [vmem:[#allocation4 + $0x8] sm:$0xff] %v99
  %118 = vst [vmem:[#allocation4 + $0x10] sm:$0xff] %v102
  %119 = vst [vmem:[#allocation4 + $0x18] sm:$0xff] %v104
  %120 = vst [vmem:[#allocation4 + $0x20] sm:$0xff] %v107
  %121 = vst [vmem:[#allocation4 + $0x28] sm:$0xff] %v109
  %122 = vst [vmem:[#allocation4 + $0x30] sm:$0xff] %v112
  %123 = vst [vmem:[#allocation4 + $0x38] sm:$0xff] %v114
  %v124 = vld [vmem:[%s5] sm:$0x1]
  %v126 = vperm.slane %v124, 0
  %v128 = vld [vmem:[#allocation4] sm:$0xff]
  %v129 = vld [vmem:[#allocation2] sm:$0xff]
  %v130 = vpack.c.bf16 %v129, %v129
  %v131 = vld [vmem:[%s3] sm:$0xf]
  %v132 = vld [vmem:[%s3 + $0x4] sm:$0xf]
  %v133 = vld [vmem:[%s3 + $0x8] sm:$0xf]
  %v134 = vld [vmem:[%s3 + $0xc] sm:$0xf]
  %v139 = vunpack.c.l.b16 %v131
  %v140 = vunpack.c.l.b16 %v132
  %v141 = vunpack.c.l.b16 %v133
  %v142 = vunpack.c.l.b16 %v134
  %v143 = vpack.c.b16 %v140, %v139
  %v144 = vpack.c.b16 %v142, %v141
  %vm147 = vcmask 261120
  %v149 = vsel %vm147, %v130, 0
  %151 = vmatpush.bf16.msra.mxu0 0
  %152 = vmatpush.bf16.msra.mxu0 0
  %153 = vmatpush.bf16.msra.mxu0 0
  %154 = vmatpush.bf16.msra.mxu0 0
  %155 = vmatpush.bf16.msra.mxu0 0
  %156 = vmatpush.bf16.msra.mxu0 0
  %157 = vmatpush.bf16.msra.mxu0 %v144
  %158 = vmatpush.bf16.msra.mxu0 %v143
  %159 = vmatmul.bf16.gmra.mxu0 %v149
  %v160 = vpop.f32.mrf.mxu0
  %v161 = vadd.f32 0.0, %v160
  %v162 = vpop.f32.mrf.mxu0
  %163 = vdwg.mxu0
  %v164 = vadd.f32 %v128, %v161
  %v165 = vld [vmem:[#allocation3] sm:$0xff]
  %v166 = vxor.u32 %v164, 2147483648
  %v167 = vmul.f32 %v166, 1.442695
  %v168 = vpow.pop %v167
  %v169 = vadd.f32 %v168, 1.0
  %v170 = vrcp.pop %v169
  %v171 = vmul.f32 %v169, %v170
  %v172 = vsub.f32 1.0, %v171
  %v173 = vmul.f32 %v170, %v172
  %v174 = vadd.f32 %v170, %v173
  %vm175 = vweird.f32 %v169
  %vm176 = vweird.f32 %v170
  %vm177 = vmor %vm175, %vm176
  %v178 = vsel %vm177, %v170, %v174
  %v179 = vand.u32 2147483647, %v169
  %vm180 = vcmp.eq.f32.partialorder %v179, 8.507059e+37
  %v181 = vand.u32 %v169, 2147483648
  %v182 = vor.u32 1.1754944e-38, %v181
  %v183 = vsel %vm180, %v182, %v178
  %v184 = vmul.f32 1.0, %v183
  %v185 = vtanh.pop %v164
  %187 = vrot.lane.b32.xlu0 %v165, 32
  %v188 = vpop.permute.xlu0 %187
  %v190 = vmul.f32 %v184, %v188
  %192 = vrot.lane.b32.xlu0 %v185, 32
  %v193 = vpop.permute.xlu0 %192
  %v195 = vmul.f32 %v184, %v193
  %197 = vrot.lane.b32.xlu0 %v195, 32
  %v198 = vpop.permute.xlu0 %197
  %v200 = vadd.f32 %v190, %v198
  %v201 = vtanh.pop %v200
  %203 = vrot.lane.b32.xlu0 %v201, 32
  %v204 = vpop.permute.xlu0 %203
  %v206 = vmul.f32 %v184, %v204
  %208 = vrot.lane.b32.xlu0 %v206, 64
  %v209 = vpop.permute.xlu0 %208
  %211 = vst.msk [vmem:[#allocation2] sm:$0xff] %vm147, %v209
  %213 = vrot.lane.b32.xlu0 %v200, 96
  %v214 = vpop.permute.xlu0 %213
  %216 = vst.msk [vmem:[#allocation3] sm:$0xff] %vm147, %v214
  %v217 = vld [vmem:[#allocation2] sm:$0xff]
  %v218 = vpack.c.bf16 %v217, %v217
  %v219 = vld [vmem:[%s4] sm:$0xf]
  %v220 = vld [vmem:[%s4 + $0x4] sm:$0xf]
  %v221 = vld [vmem:[%s4 + $0x8] sm:$0xf]
  %v222 = vld [vmem:[%s4 + $0xc] sm:$0xf]
  %v223 = vld [vmem:[%s4 + $0x10] sm:$0xf]
  %v224 = vld [vmem:[%s4 + $0x14] sm:$0xf]
  %v225 = vld [vmem:[%s4 + $0x18] sm:$0xf]
  %v226 = vld [vmem:[%s4 + $0x1c] sm:$0xf]
  %v235 = vunpack.c.l.b16 %v219
  %v236 = vunpack.c.l.b16 %v220
  %v237 = vunpack.c.l.b16 %v221
  %v238 = vunpack.c.l.b16 %v222
  %v239 = vunpack.c.l.b16 %v223
  %v240 = vunpack.c.l.b16 %v224
  %v241 = vunpack.c.l.b16 %v225
  %v242 = vunpack.c.l.b16 %v226
  %v243 = vpack.c.b16 %v236, %v235
  %v244 = vpack.c.b16 %v238, %v237
  %v245 = vpack.c.b16 %v240, %v239
  %v246 = vpack.c.b16 %v242, %v241
  %vm251 = vcmask 523264
  %v253 = vsel %vm251, %v218, 0
  %255 = vmatpush.bf16.msra.mxu0 0
  %256 = vmatpush.bf16.msra.mxu0 0
  %257 = vmatpush.bf16.msra.mxu0 0
  %258 = vmatpush.bf16.msra.mxu0 0
  %259 = vmatpush.bf16.msra.mxu0 %v246
  %260 = vmatpush.bf16.msra.mxu0 %v245
  %261 = vmatpush.bf16.msra.mxu0 %v244
  %262 = vmatpush.bf16.msra.mxu0 %v243
  %263 = vmatmul.bf16.gmra.mxu0 %v253
  %v264 = vpop.f32.mrf.mxu0
  %v265 = vadd.f32 %v126, %v264
  %v266 = vpop.f32.mrf.mxu0
  %267 = vdwg.mxu0
  %v268 = vld [vmem:[#allocation3] sm:$0xff]
  %v269 = vxor.u32 %v265, 2147483648
  %v270 = vmul.f32 %v269, 1.442695
  %v271 = vpow.pop %v270
  %v272 = vadd.f32 %v271, 1.0
  %v273 = vrcp.pop %v272
  %v274 = vmul.f32 %v272, %v273
  %v275 = vsub.f32 1.0, %v274
  %v276 = vmul.f32 %v273, %v275
  %v277 = vadd.f32 %v273, %v276
  %vm278 = vweird.f32 %v272
  %vm279 = vweird.f32 %v273
  %vm280 = vmor %vm278, %vm279
  %v281 = vsel %vm280, %v273, %v277
  %v282 = vand.u32 2147483647, %v272
  %vm283 = vcmp.eq.f32.partialorder %v282, 8.507059e+37
  %v284 = vand.u32 %v272, 2147483648
  %v285 = vor.u32 1.1754944e-38, %v284
  %v286 = vsel %vm283, %v285, %v281
  %v287 = vmul.f32 1.0, %v286
  %v288 = vtanh.pop %v265
  %v289 = vmul.f32 %v287, %v268
  %291 = vrot.lane.b32.xlu0 %v288, 32
  %v292 = vpop.permute.xlu0 %291
  %v294 = vmul.f32 %v287, %v292
  %296 = vrot.lane.b32.xlu0 %v294, 32
  %v297 = vpop.permute.xlu0 %296
  %v299 = vadd.f32 %v289, %v297
  %v300 = vtanh.pop %v299
  %302 = vrot.lane.b32.xlu0 %v300, 32
  %v303 = vpop.permute.xlu0 %302
  %v305 = vmul.f32 %v287, %v303
  %307 = vrot.lane.b32.xlu0 %v305, 96
  %v308 = vpop.permute.xlu0 %307
  %vm310 = vcmask 523520
  %311 = vst.msk [vmem:[#allocation2] sm:$0xff] %vm310, %v308
  %312 = vst.msk [vmem:[#allocation3] sm:$0xff] %vm310, %v299
  %s313 = scalar_lea.vmem [#allocation4], 8
  %v314 = vld [vmem:[%s313] sm:$0xff]
  %v315 = vld [vmem:[#allocation2] sm:$0xff]
  %v316 = vpack.c.bf16 %v315, %v315
  %v317 = vld [vmem:[%s3] sm:$0xf]
  %v318 = vld [vmem:[%s3 + $0x4] sm:$0xf]
  %v319 = vld [vmem:[%s3 + $0x8] sm:$0xf]
  %v320 = vld [vmem:[%s3 + $0xc] sm:$0xf]
  %v325 = vunpack.c.l.b16 %v317
  %v326 = vunpack.c.l.b16 %v318
  %v327 = vunpack.c.l.b16 %v319
  %v328 = vunpack.c.l.b16 %v320
  %v329 = vpack.c.b16 %v326, %v325
  %v330 = vpack.c.b16 %v328, %v327
  %v334 = vsel %vm147, %v316, 0
  %336 = vmatpush.bf16.msra.mxu0 0
  %337 = vmatpush.bf16.msra.mxu0 0
  %338 = vmatpush.bf16.msra.mxu0 0
  %339 = vmatpush.bf16.msra.mxu0 0
  %340 = vmatpush.bf16.msra.mxu0 0
  %341 = vmatpush.bf16.msra.mxu0 0
  %342 = vmatpush.bf16.msra.mxu0 %v330
  %343 = vmatpush.bf16.msra.mxu0 %v329
  %344 = vmatmul.bf16.gmra.mxu0 %v334
  %v345 = vpop.f32.mrf.mxu0
  %v346 = vadd.f32 0.0, %v345
  %v347 = vpop.f32.mrf.mxu0
  %348 = vdwg.mxu0
  %v349 = vadd.f32 %v314, %v346
  %v350 = vld [vmem:[#allocation3] sm:$0xff]
  %v351 = vxor.u32 %v349, 2147483648
  %v352 = vmul.f32 %v351, 1.442695
  %v353 = vpow.pop %v352
  %v354 = vadd.f32 %v353, 1.0
  %v355 = vrcp.pop %v354
  %v356 = vmul.f32 %v354, %v355
  %v357 = vsub.f32 1.0, %v356
  %v358 = vmul.f32 %v355, %v357
  %v359 = vadd.f32 %v355, %v358
  %vm360 = vweird.f32 %v354
  %vm361 = vweird.f32 %v355
  %vm362 = vmor %vm360, %vm361
  %v363 = vsel %vm362, %v355, %v359
  %v364 = vand.u32 2147483647, %v354
  %vm365 = vcmp.eq.f32.partialorder %v364, 8.507059e+37
  %v366 = vand.u32 %v354, 2147483648
  %v367 = vor.u32 1.1754944e-38, %v366
  %v368 = vsel %vm365, %v367, %v363
  %v369 = vmul.f32 1.0, %v368
  %v370 = vtanh.pop %v349
  %372 = vrot.lane.b32.xlu0 %v350, 32
  %v373 = vpop.permute.xlu0 %372
  %v375 = vmul.f32 %v369, %v373
  %377 = vrot.lane.b32.xlu0 %v370, 32
  %v378 = vpop.permute.xlu0 %377
  %v380 = vmul.f32 %v369, %v378
  %382 = vrot.lane.b32.xlu0 %v380, 32
  %v383 = vpop.permute.xlu0 %382
  %v385 = vadd.f32 %v375, %v383
  %v386 = vtanh.pop %v385
  %388 = vrot.lane.b32.xlu0 %v386, 32
  %v389 = vpop.permute.xlu0 %388
  %v391 = vmul.f32 %v369, %v389
  %393 = vrot.lane.b32.xlu0 %v391, 64
  %v394 = vpop.permute.xlu0 %393
  %396 = vst.msk [vmem:[#allocation2] sm:$0xff] %vm147, %v394
  %398 = vrot.lane.b32.xlu0 %v385, 96
  %v399 = vpop.permute.xlu0 %398
  %401 = vst.msk [vmem:[#allocation3] sm:$0xff] %vm147, %v399
  %v402 = vld [vmem:[#allocation2] sm:$0xff]
  %v403 = vpack.c.bf16 %v402, %v402
  %v404 = vld [vmem:[%s4] sm:$0xf]
  %v405 = vld [vmem:[%s4 + $0x4] sm:$0xf]
  %v406 = vld [vmem:[%s4 + $0x8] sm:$0xf]
  %v407 = vld [vmem:[%s4 + $0xc] sm:$0xf]
  %v408 = vld [vmem:[%s4 + $0x10] sm:$0xf]
  %v409 = vld [vmem:[%s4 + $0x14] sm:$0xf]
  %v410 = vld [vmem:[%s4 + $0x18] sm:$0xf]
  %v411 = vld [vmem:[%s4 + $0x1c] sm:$0xf]
  %v420 = vunpack.c.l.b16 %v404
  %v421 = vunpack.c.l.b16 %v405
  %v422 = vunpack.c.l.b16 %v406
  %v423 = vunpack.c.l.b16 %v407
  %v424 = vunpack.c.l.b16 %v408
  %v425 = vunpack.c.l.b16 %v409
  %v426 = vunpack.c.l.b16 %v410
  %v427 = vunpack.c.l.b16 %v411
  %v428 = vpack.c.b16 %v421, %v420
  %v429 = vpack.c.b16 %v423, %v422
  %v430 = vpack.c.b16 %v425, %v424
  %v431 = vpack.c.b16 %v427, %v426
  %v437 = vsel %vm251, %v403, 0
  %439 = vmatpush.bf16.msra.mxu0 0
  %440 = vmatpush.bf16.msra.mxu0 0
  %441 = vmatpush.bf16.msra.mxu0 0
  %442 = vmatpush.bf16.msra.mxu0 0
  %443 = vmatpush.bf16.msra.mxu0 %v431
  %444 = vmatpush.bf16.msra.mxu0 %v430
  %445 = vmatpush.bf16.msra.mxu0 %v429
  %446 = vmatpush.bf16.msra.mxu0 %v428
  %447 = vmatmul.bf16.gmra.mxu0 %v437
  %v448 = vpop.f32.mrf.mxu0
  %v449 = vadd.f32 %v126, %v448
  %v450 = vpop.f32.mrf.mxu0
  %451 = vdwg.mxu0
  %v452 = vld [vmem:[#allocation3] sm:$0xff]
  %v453 = vxor.u32 %v449, 2147483648
  %v454 = vmul.f32 %v453, 1.442695
  %v455 = vpow.pop %v454
  %v456 = vadd.f32 %v455, 1.0
  %v457 = vrcp.pop %v456
  %v458 = vmul.f32 %v456, %v457
  %v459 = vsub.f32 1.0, %v458
  %v460 = vmul.f32 %v457, %v459
  %v461 = vadd.f32 %v457, %v460
  %vm462 = vweird.f32 %v456
  %vm463 = vweird.f32 %v457
  %vm464 = vmor %vm462, %vm463
  %v465 = vsel %vm464, %v457, %v461
  %v466 = vand.u32 2147483647, %v456
  %vm467 = vcmp.eq.f32.partialorder %v466, 8.507059e+37
  %v468 = vand.u32 %v456, 2147483648
  %v469 = vor.u32 1.1754944e-38, %v468
  %v470 = vsel %vm467, %v469, %v465
  %v471 = vmul.f32 1.0, %v470
  %v472 = vtanh.pop %v449
  %v473 = vmul.f32 %v471, %v452
  %475 = vrot.lane.b32.xlu0 %v472, 32
  %v476 = vpop.permute.xlu0 %475
  %v478 = vmul.f32 %v471, %v476
  %480 = vrot.lane.b32.xlu0 %v478, 32
  %v481 = vpop.permute.xlu0 %480
  %v483 = vadd.f32 %v473, %v481
  %v484 = vtanh.pop %v483
  %486 = vrot.lane.b32.xlu0 %v484, 32
  %v487 = vpop.permute.xlu0 %486
  %v489 = vmul.f32 %v471, %v487
  %491 = vrot.lane.b32.xlu0 %v489, 96
  %v492 = vpop.permute.xlu0 %491
  %494 = vst.msk [vmem:[#allocation2] sm:$0xff] %vm310, %v492
  %495 = vst.msk [vmem:[#allocation3] sm:$0xff] %vm310, %v483
  %s496 = scalar_lea.vmem [#allocation4], 16
  %v497 = vld [vmem:[%s496] sm:$0xff]
  %v498 = vld [vmem:[#allocation2] sm:$0xff]
  %v499 = vpack.c.bf16 %v498, %v498
  %v500 = vld [vmem:[%s3] sm:$0xf]
  %v501 = vld [vmem:[%s3 + $0x4] sm:$0xf]
  %v502 = vld [vmem:[%s3 + $0x8] sm:$0xf]
  %v503 = vld [vmem:[%s3 + $0xc] sm:$0xf]
  %v508 = vunpack.c.l.b16 %v500
  %v509 = vunpack.c.l.b16 %v501
  %v510 = vunpack.c.l.b16 %v502
  %v511 = vunpack.c.l.b16 %v503
  %v512 = vpack.c.b16 %v509, %v508
  %v513 = vpack.c.b16 %v511, %v510
  %v517 = vsel %vm147, %v499, 0
  %519 = vmatpush.bf16.msra.mxu0 0
  %520 = vmatpush.bf16.msra.mxu0 0
  %521 = vmatpush.bf16.msra.mxu0 0
  %522 = vmatpush.bf16.msra.mxu0 0
  %523 = vmatpush.bf16.msra.mxu0 0
  %524 = vmatpush.bf16.msra.mxu0 0
  %525 = vmatpush.bf16.msra.mxu0 %v513
  %526 = vmatpush.bf16.msra.mxu0 %v512
  %527 = vmatmul.bf16.gmra.mxu0 %v517
  %v528 = vpop.f32.mrf.mxu0
  %v529 = vadd.f32 0.0, %v528
  %v530 = vpop.f32.mrf.mxu0
  %531 = vdwg.mxu0
  %v532 = vadd.f32 %v497, %v529
  %v533 = vld [vmem:[#allocation3] sm:$0xff]
  %v534 = vxor.u32 %v532, 2147483648
  %v535 = vmul.f32 %v534, 1.442695
  %v536 = vpow.pop %v535
  %v537 = vadd.f32 %v536, 1.0
  %v538 = vrcp.pop %v537
  %v539 = vmul.f32 %v537, %v538
  %v540 = vsub.f32 1.0, %v539
  %v541 = vmul.f32 %v538, %v540
  %v542 = vadd.f32 %v538, %v541
  %vm543 = vweird.f32 %v537
  %vm544 = vweird.f32 %v538
  %vm545 = vmor %vm543, %vm544
  %v546 = vsel %vm545, %v538, %v542
  %v547 = vand.u32 2147483647, %v537
  %vm548 = vcmp.eq.f32.partialorder %v547, 8.507059e+37
  %v549 = vand.u32 %v537, 2147483648
  %v550 = vor.u32 1.1754944e-38, %v549
  %v551 = vsel %vm548, %v550, %v546
  %v552 = vmul.f32 1.0, %v551
  %v553 = vtanh.pop %v532
  %555 = vrot.lane.b32.xlu0 %v533, 32
  %v556 = vpop.permute.xlu0 %555
  %v558 = vmul.f32 %v552, %v556
  %560 = vrot.lane.b32.xlu0 %v553, 32
  %v561 = vpop.permute.xlu0 %560
  %v563 = vmul.f32 %v552, %v561
  %565 = vrot.lane.b32.xlu0 %v563, 32
  %v566 = vpop.permute.xlu0 %565
  %v568 = vadd.f32 %v558, %v566
  %v569 = vtanh.pop %v568
  %571 = vrot.lane.b32.xlu0 %v569, 32
  %v572 = vpop.permute.xlu0 %571
  %v574 = vmul.f32 %v552, %v572
  %576 = vrot.lane.b32.xlu0 %v574, 64
  %v577 = vpop.permute.xlu0 %576
  %579 = vst.msk [vmem:[#allocation2] sm:$0xff] %vm147, %v577
  %581 = vrot.lane.b32.xlu0 %v568, 96
  %v582 = vpop.permute.xlu0 %581
  %584 = vst.msk [vmem:[#allocation3] sm:$0xff] %vm147, %v582
  %v585 = vld [vmem:[#allocation2] sm:$0xff]
  %v586 = vpack.c.bf16 %v585, %v585
  %v587 = vld [vmem:[%s4] sm:$0xf]
  %v588 = vld [vmem:[%s4 + $0x4] sm:$0xf]
  %v589 = vld [vmem:[%s4 + $0x8] sm:$0xf]
  %v590 = vld [vmem:[%s4 + $0xc] sm:$0xf]
  %v591 = vld [vmem:[%s4 + $0x10] sm:$0xf]
  %v592 = vld [vmem:[%s4 + $0x14] sm:$0xf]
  %v593 = vld [vmem:[%s4 + $0x18] sm:$0xf]
  %v594 = vld [vmem:[%s4 + $0x1c] sm:$0xf]
  %v603 = vunpack.c.l.b16 %v587
  %v604 = vunpack.c.l.b16 %v588
  %v605 = vunpack.c.l.b16 %v589
  %v606 = vunpack.c.l.b16 %v590
  %v607 = vunpack.c.l.b16 %v591
  %v608 = vunpack.c.l.b16 %v592
  %v609 = vunpack.c.l.b16 %v593
  %v610 = vunpack.c.l.b16 %v594
  %v611 = vpack.c.b16 %v604, %v603
  %v612 = vpack.c.b16 %v606, %v605
  %v613 = vpack.c.b16 %v608, %v607
  %v614 = vpack.c.b16 %v610, %v609
  %v620 = vsel %vm251, %v586, 0
  %622 = vmatpush.bf16.msra.mxu0 0
  %623 = vmatpush.bf16.msra.mxu0 0
  %624 = vmatpush.bf16.msra.mxu0 0
  %625 = vmatpush.bf16.msra.mxu0 0
  %626 = vmatpush.bf16.msra.mxu0 %v614
  %627 = vmatpush.bf16.msra.mxu0 %v613
  %628 = vmatpush.bf16.msra.mxu0 %v612
  %629 = vmatpush.bf16.msra.mxu0 %v611
  %630 = vmatmul.bf16.gmra.mxu0 %v620
  %v631 = vpop.f32.mrf.mxu0
  %v632 = vadd.f32 %v126, %v631
  %v633 = vpop.f32.mrf.mxu0
  %634 = vdwg.mxu0
  %v635 = vld [vmem:[#allocation3] sm:$0xff]
  %v636 = vxor.u32 %v632, 2147483648
  %v637 = vmul.f32 %v636, 1.442695
  %v638 = vpow.pop %v637
  %v639 = vadd.f32 %v638, 1.0
  %v640 = vrcp.pop %v639
  %v641 = vmul.f32 %v639, %v640
  %v642 = vsub.f32 1.0, %v641
  %v643 = vmul.f32 %v640, %v642
  %v644 = vadd.f32 %v640, %v643
  %vm645 = vweird.f32 %v639
  %vm646 = vweird.f32 %v640
  %vm647 = vmor %vm645, %vm646
  %v648 = vsel %vm647, %v640, %v644
  %v649 = vand.u32 2147483647, %v639
  %vm650 = vcmp.eq.f32.partialorder %v649, 8.507059e+37
  %v651 = vand.u32 %v639, 2147483648
  %v652 = vor.u32 1.1754944e-38, %v651
  %v653 = vsel %vm650, %v652, %v648
  %v654 = vmul.f32 1.0, %v653
  %v655 = vtanh.pop %v632
  %v656 = vmul.f32 %v654, %v635
  %658 = vrot.lane.b32.xlu0 %v655, 32
  %v659 = vpop.permute.xlu0 %658
  %v661 = vmul.f32 %v654, %v659
  %663 = vrot.lane.b32.xlu0 %v661, 32
  %v664 = vpop.permute.xlu0 %663
  %v666 = vadd.f32 %v656, %v664
  %v667 = vtanh.pop %v666
  %669 = vrot.lane.b32.xlu0 %v667, 32
  %v670 = vpop.permute.xlu0 %669
  %v672 = vmul.f32 %v654, %v670
  %674 = vrot.lane.b32.xlu0 %v672, 96
  %v675 = vpop.permute.xlu0 %674
  %677 = vst.msk [vmem:[#allocation2] sm:$0xff] %vm310, %v675
  %678 = vst.msk [vmem:[#allocation3] sm:$0xff] %vm310, %v666
  %s679 = scalar_lea.vmem [#allocation4], 24
  %v680 = vld [vmem:[%s679] sm:$0xff]
  %v681 = vld [vmem:[#allocation2] sm:$0xff]
  %v682 = vpack.c.bf16 %v681, %v681
  %v683 = vld [vmem:[%s3] sm:$0xf]
  %v684 = vld [vmem:[%s3 + $0x4] sm:$0xf]
  %v685 = vld [vmem:[%s3 + $0x8] sm:$0xf]
  %v686 = vld [vmem:[%s3 + $0xc] sm:$0xf]
  %v691 = vunpack.c.l.b16 %v683
  %v692 = vunpack.c.l.b16 %v684
  %v693 = vunpack.c.l.b16 %v685
  %v694 = vunpack.c.l.b16 %v686
  %v695 = vpack.c.b16 %v692, %v691
  %v696 = vpack.c.b16 %v694, %v693
  %v700 = vsel %vm147, %v682, 0
  %702 = vmatpush.bf16.msra.mxu0 0
  %703 = vmatpush.bf16.msra.mxu0 0
  %704 = vmatpush.bf16.msra.mxu0 0
  %705 = vmatpush.bf16.msra.mxu0 0
  %706 = vmatpush.bf16.msra.mxu0 0
  %707 = vmatpush.bf16.msra.mxu0 0
  %708 = vmatpush.bf16.msra.mxu0 %v696
  %709 = vmatpush.bf16.msra.mxu0 %v695
  %710 = vmatmul.bf16.gmra.mxu0 %v700
  %v711 = vpop.f32.mrf.mxu0
  %v712 = vadd.f32 0.0, %v711
  %v713 = vpop.f32.mrf.mxu0
  %714 = vdwg.mxu0
  %v715 = vadd.f32 %v680, %v712
  %v716 = vld [vmem:[#allocation3] sm:$0xff]
  %v717 = vxor.u32 %v715, 2147483648
  %v718 = vmul.f32 %v717, 1.442695
  %v719 = vpow.pop %v718
  %v720 = vadd.f32 %v719, 1.0
  %v721 = vrcp.pop %v720
  %v722 = vmul.f32 %v720, %v721
  %v723 = vsub.f32 1.0, %v722
  %v724 = vmul.f32 %v721, %v723
  %v725 = vadd.f32 %v721, %v724
  %vm726 = vweird.f32 %v720
  %vm727 = vweird.f32 %v721
  %vm728 = vmor %vm726, %vm727
  %v729 = vsel %vm728, %v721, %v725
  %v730 = vand.u32 2147483647, %v720
  %vm731 = vcmp.eq.f32.partialorder %v730, 8.507059e+37
  %v732 = vand.u32 %v720, 2147483648
  %v733 = vor.u32 1.1754944e-38, %v732
  %v734 = vsel %vm731, %v733, %v729
  %v735 = vmul.f32 1.0, %v734
  %v736 = vtanh.pop %v715
  %738 = vrot.lane.b32.xlu0 %v716, 32
  %v739 = vpop.permute.xlu0 %738
  %v741 = vmul.f32 %v735, %v739
  %743 = vrot.lane.b32.xlu0 %v736, 32
  %v744 = vpop.permute.xlu0 %743
  %v746 = vmul.f32 %v735, %v744
  %748 = vrot.lane.b32.xlu0 %v746, 32
  %v749 = vpop.permute.xlu0 %748
  %v751 = vadd.f32 %v741, %v749
  %v752 = vtanh.pop %v751
  %754 = vrot.lane.b32.xlu0 %v752, 32
  %v755 = vpop.permute.xlu0 %754
  %v757 = vmul.f32 %v735, %v755
  %759 = vrot.lane.b32.xlu0 %v757, 64
  %v760 = vpop.permute.xlu0 %759
  %762 = vst.msk [vmem:[#allocation2] sm:$0xff] %vm147, %v760
  %764 = vrot.lane.b32.xlu0 %v751, 96
  %v765 = vpop.permute.xlu0 %764
  %767 = vst.msk [vmem:[#allocation3] sm:$0xff] %vm147, %v765
  %v768 = vld [vmem:[#allocation2] sm:$0xff]
  %v769 = vpack.c.bf16 %v768, %v768
  %v770 = vld [vmem:[%s4] sm:$0xf]
  %v771 = vld [vmem:[%s4 + $0x4] sm:$0xf]
  %v772 = vld [vmem:[%s4 + $0x8] sm:$0xf]
  %v773 = vld [vmem:[%s4 + $0xc] sm:$0xf]
  %v774 = vld [vmem:[%s4 + $0x10] sm:$0xf]
  %v775 = vld [vmem:[%s4 + $0x14] sm:$0xf]
  %v776 = vld [vmem:[%s4 + $0x18] sm:$0xf]
  %v777 = vld [vmem:[%s4 + $0x1c] sm:$0xf]
  %v786 = vunpack.c.l.b16 %v770
  %v787 = vunpack.c.l.b16 %v771
  %v788 = vunpack.c.l.b16 %v772
  %v789 = vunpack.c.l.b16 %v773
  %v790 = vunpack.c.l.b16 %v774
  %v791 = vunpack.c.l.b16 %v775
  %v792 = vunpack.c.l.b16 %v776
  %v793 = vunpack.c.l.b16 %v777
  %v794 = vpack.c.b16 %v787, %v786
  %v795 = vpack.c.b16 %v789, %v788
  %v796 = vpack.c.b16 %v791, %v790
  %v797 = vpack.c.b16 %v793, %v792
  %v803 = vsel %vm251, %v769, 0
  %805 = vmatpush.bf16.msra.mxu0 0
  %806 = vmatpush.bf16.msra.mxu0 0
  %807 = vmatpush.bf16.msra.mxu0 0
  %808 = vmatpush.bf16.msra.mxu0 0
  %809 = vmatpush.bf16.msra.mxu0 %v797
  %810 = vmatpush.bf16.msra.mxu0 %v796
  %811 = vmatpush.bf16.msra.mxu0 %v795
  %812 = vmatpush.bf16.msra.mxu0 %v794
  %813 = vmatmul.bf16.gmra.mxu0 %v803
  %v814 = vpop.f32.mrf.mxu0
  %v815 = vadd.f32 %v126, %v814
  %v816 = vpop.f32.mrf.mxu0
  %817 = vdwg.mxu0
  %v818 = vld [vmem:[#allocation3] sm:$0xff]
  %v819 = vxor.u32 %v815, 2147483648
  %v820 = vmul.f32 %v819, 1.442695
  %v821 = vpow.pop %v820
  %v822 = vadd.f32 %v821, 1.0
  %v823 = vrcp.pop %v822
  %v824 = vmul.f32 %v822, %v823
  %v825 = vsub.f32 1.0, %v824
  %v826 = vmul.f32 %v823, %v825
  %v827 = vadd.f32 %v823, %v826
  %vm828 = vweird.f32 %v822
  %vm829 = vweird.f32 %v823
  %vm830 = vmor %vm828, %vm829
  %v831 = vsel %vm830, %v823, %v827
  %v832 = vand.u32 2147483647, %v822
  %vm833 = vcmp.eq.f32.partialorder %v832, 8.507059e+37
  %v834 = vand.u32 %v822, 2147483648
  %v835 = vor.u32 1.1754944e-38, %v834
  %v836 = vsel %vm833, %v835, %v831
  %v837 = vmul.f32 1.0, %v836
  %v838 = vtanh.pop %v815
  %v839 = vmul.f32 %v837, %v818
  %841 = vrot.lane.b32.xlu0 %v838, 32
  %v842 = vpop.permute.xlu0 %841
  %v844 = vmul.f32 %v837, %v842
  %846 = vrot.lane.b32.xlu0 %v844, 32
  %v847 = vpop.permute.xlu0 %846
  %v849 = vadd.f32 %v839, %v847
  %v850 = vtanh.pop %v849
  %852 = vrot.lane.b32.xlu0 %v850, 32
  %v853 = vpop.permute.xlu0 %852
  %v855 = vmul.f32 %v837, %v853
  %857 = vrot.lane.b32.xlu0 %v855, 96
  %v858 = vpop.permute.xlu0 %857
  %860 = vst.msk [vmem:[#allocation2] sm:$0xff] %vm310, %v858
  %861 = vst.msk [vmem:[#allocation3] sm:$0xff] %vm310, %v849
  %s862 = scalar_lea.vmem [#allocation4], 32
  %v863 = vld [vmem:[%s862] sm:$0xff]
  %v864 = vld [vmem:[#allocation2] sm:$0xff]
  %v865 = vpack.c.bf16 %v864, %v864
  %v866 = vld [vmem:[%s3] sm:$0xf]
  %v867 = vld [vmem:[%s3 + $0x4] sm:$0xf]
  %v868 = vld [vmem:[%s3 + $0x8] sm:$0xf]
  %v869 = vld [vmem:[%s3 + $0xc] sm:$0xf]
  %v874 = vunpack.c.l.b16 %v866
  %v875 = vunpack.c.l.b16 %v867
  %v876 = vunpack.c.l.b16 %v868
  %v877 = vunpack.c.l.b16 %v869
  %v878 = vpack.c.b16 %v875, %v874
  %v879 = vpack.c.b16 %v877, %v876
  %v883 = vsel %vm147, %v865, 0
  %885 = vmatpush.bf16.msra.mxu0 0
  %886 = vmatpush.bf16.msra.mxu0 0
  %887 = vmatpush.bf16.msra.mxu0 0
  %888 = vmatpush.bf16.msra.mxu0 0
  %889 = vmatpush.bf16.msra.mxu0 0
  %890 = vmatpush.bf16.msra.mxu0 0
  %891 = vmatpush.bf16.msra.mxu0 %v879
  %892 = vmatpush.bf16.msra.mxu0 %v878
  %893 = vmatmul.bf16.gmra.mxu0 %v883
  %v894 = vpop.f32.mrf.mxu0
  %v895 = vadd.f32 0.0, %v894
  %v896 = vpop.f32.mrf.mxu0
  %897 = vdwg.mxu0
  %v898 = vadd.f32 %v863, %v895
  %v899 = vld [vmem:[#allocation3] sm:$0xff]
  %v900 = vxor.u32 %v898, 2147483648
  %v901 = vmul.f32 %v900, 1.442695
  %v902 = vpow.pop %v901
  %v903 = vadd.f32 %v902, 1.0
  %v904 = vrcp.pop %v903
  %v905 = vmul.f32 %v903, %v904
  %v906 = vsub.f32 1.0, %v905
  %v907 = vmul.f32 %v904, %v906
  %v908 = vadd.f32 %v904, %v907
  %vm909 = vweird.f32 %v903
  %vm910 = vweird.f32 %v904
  %vm911 = vmor %vm909, %vm910
  %v912 = vsel %vm911, %v904, %v908
  %v913 = vand.u32 2147483647, %v903
  %vm914 = vcmp.eq.f32.partialorder %v913, 8.507059e+37
  %v915 = vand.u32 %v903, 2147483648
  %v916 = vor.u32 1.1754944e-38, %v915
  %v917 = vsel %vm914, %v916, %v912
  %v918 = vmul.f32 1.0, %v917
  %v919 = vtanh.pop %v898
  %921 = vrot.lane.b32.xlu0 %v899, 32
  %v922 = vpop.permute.xlu0 %921
  %v924 = vmul.f32 %v918, %v922
  %926 = vrot.lane.b32.xlu0 %v919, 32
  %v927 = vpop.permute.xlu0 %926
  %v929 = vmul.f32 %v918, %v927
  %931 = vrot.lane.b32.xlu0 %v929, 32
  %v932 = vpop.permute.xlu0 %931
  %v934 = vadd.f32 %v924, %v932
  %v935 = vtanh.pop %v934
  %937 = vrot.lane.b32.xlu0 %v935, 32
  %v938 = vpop.permute.xlu0 %937
  %v940 = vmul.f32 %v918, %v938
  %942 = vrot.lane.b32.xlu0 %v940, 64
  %v943 = vpop.permute.xlu0 %942
  %945 = vst.msk [vmem:[#allocation2] sm:$0xff] %vm147, %v943
  %947 = vrot.lane.b32.xlu0 %v934, 96
  %v948 = vpop.permute.xlu0 %947
  %950 = vst.msk [vmem:[#allocation3] sm:$0xff] %vm147, %v948
  %v951 = vld [vmem:[#allocation2] sm:$0xff]
  %v952 = vpack.c.bf16 %v951, %v951
  %v953 = vld [vmem:[%s4] sm:$0xf]
  %v954 = vld [vmem:[%s4 + $0x4] sm:$0xf]
  %v955 = vld [vmem:[%s4 + $0x8] sm:$0xf]
  %v956 = vld [vmem:[%s4 + $0xc] sm:$0xf]
  %v957 = vld [vmem:[%s4 + $0x10] sm:$0xf]
  %v958 = vld [vmem:[%s4 + $0x14] sm:$0xf]
  %v959 = vld [vmem:[%s4 + $0x18] sm:$0xf]
  %v960 = vld [vmem:[%s4 + $0x1c] sm:$0xf]
  %v969 = vunpack.c.l.b16 %v953
  %v970 = vunpack.c.l.b16 %v954
  %v971 = vunpack.c.l.b16 %v955
  %v972 = vunpack.c.l.b16 %v956
  %v973 = vunpack.c.l.b16 %v957
  %v974 = vunpack.c.l.b16 %v958
  %v975 = vunpack.c.l.b16 %v959
  %v976 = vunpack.c.l.b16 %v960
  %v977 = vpack.c.b16 %v970, %v969
  %v978 = vpack.c.b16 %v972, %v971
  %v979 = vpack.c.b16 %v974, %v973
  %v980 = vpack.c.b16 %v976, %v975
  %v986 = vsel %vm251, %v952, 0
  %988 = vmatpush.bf16.msra.mxu0 0
  %989 = vmatpush.bf16.msra.mxu0 0
  %990 = vmatpush.bf16.msra.mxu0 0
  %991 = vmatpush.bf16.msra.mxu0 0
  %992 = vmatpush.bf16.msra.mxu0 %v980
  %993 = vmatpush.bf16.msra.mxu0 %v979
  %994 = vmatpush.bf16.msra.mxu0 %v978
  %995 = vmatpush.bf16.msra.mxu0 %v977
  %996 = vmatmul.bf16.gmra.mxu0 %v986
  %v997 = vpop.f32.mrf.mxu0
  %v998 = vadd.f32 %v126, %v997
  %v999 = vpop.f32.mrf.mxu0
  %1000 = vdwg.mxu0
  %v1001 = vld [vmem:[#allocation3] sm:$0xff]
  %v1002 = vxor.u32 %v998, 2147483648
  %v1003 = vmul.f32 %v1002, 1.442695
  %v1004 = vpow.pop %v1003
  %v1005 = vadd.f32 %v1004, 1.0
  %v1006 = vrcp.pop %v1005
  %v1007 = vmul.f32 %v1005, %v1006
  %v1008 = vsub.f32 1.0, %v1007
  %v1009 = vmul.f32 %v1006, %v1008
  %v1010 = vadd.f32 %v1006, %v1009
  %vm1011 = vweird.f32 %v1005
  %vm1012 = vweird.f32 %v1006
  %vm1013 = vmor %vm1011, %vm1012
  %v1014 = vsel %vm1013, %v1006, %v1010
  %v1015 = vand.u32 2147483647, %v1005
  %vm1016 = vcmp.eq.f32.partialorder %v1015, 8.507059e+37
  %v1017 = vand.u32 %v1005, 2147483648
  %v1018 = vor.u32 1.1754944e-38, %v1017
  %v1019 = vsel %vm1016, %v1018, %v1014
  %v1020 = vmul.f32 1.0, %v1019
  %v1021 = vtanh.pop %v998
  %v1022 = vmul.f32 %v1020, %v1001
  %1024 = vrot.lane.b32.xlu0 %v1021, 32
  %v1025 = vpop.permute.xlu0 %1024
  %v1027 = vmul.f32 %v1020, %v1025
  %1029 = vrot.lane.b32.xlu0 %v1027, 32
  %v1030 = vpop.permute.xlu0 %1029
  %v1032 = vadd.f32 %v1022, %v1030
  %v1033 = vtanh.pop %v1032
  %1035 = vrot.lane.b32.xlu0 %v1033, 32
  %v1036 = vpop.permute.xlu0 %1035
  %v1038 = vmul.f32 %v1020, %v1036
  %1040 = vrot.lane.b32.xlu0 %v1038, 96
  %v1041 = vpop.permute.xlu0 %1040
  %1043 = vst.msk [vmem:[#allocation2] sm:$0xff] %vm310, %v1041
  %1044 = vst.msk [vmem:[#allocation3] sm:$0xff] %vm310, %v1032
  %s1045 = scalar_lea.vmem [#allocation4], 40
  %v1046 = vld [vmem:[%s1045] sm:$0xff]
  %v1047 = vld [vmem:[#allocation2] sm:$0xff]
  %v1048 = vpack.c.bf16 %v1047, %v1047
  %v1049 = vld [vmem:[%s3] sm:$0xf]
  %v1050 = vld [vmem:[%s3 + $0x4] sm:$0xf]
  %v1051 = vld [vmem:[%s3 + $0x8] sm:$0xf]
  %v1052 = vld [vmem:[%s3 + $0xc] sm:$0xf]
  %v1057 = vunpack.c.l.b16 %v1049
  %v1058 = vunpack.c.l.b16 %v1050
  %v1059 = vunpack.c.l.b16 %v1051
  %v1060 = vunpack.c.l.b16 %v1052
  %v1061 = vpack.c.b16 %v1058, %v1057
  %v1062 = vpack.c.b16 %v1060, %v1059
  %v1066 = vsel %vm147, %v1048, 0
  %1068 = vmatpush.bf16.msra.mxu0 0
  %1069 = vmatpush.bf16.msra.mxu0 0
  %1070 = vmatpush.bf16.msra.mxu0 0
  %1071 = vmatpush.bf16.msra.mxu0 0
  %1072 = vmatpush.bf16.msra.mxu0 0
  %1073 = vmatpush.bf16.msra.mxu0 0
  %1074 = vmatpush.bf16.msra.mxu0 %v1062
  %1075 = vmatpush.bf16.msra.mxu0 %v1061
  %1076 = vmatmul.bf16.gmra.mxu0 %v1066
  %v1077 = vpop.f32.mrf.mxu0
  %v1078 = vadd.f32 0.0, %v1077
  %v1079 = vpop.f32.mrf.mxu0
  %1080 = vdwg.mxu0
  %v1081 = vadd.f32 %v1046, %v1078
  %v1082 = vld [vmem:[#allocation3] sm:$0xff]
  %v1083 = vxor.u32 %v1081, 2147483648
  %v1084 = vmul.f32 %v1083, 1.442695
  %v1085 = vpow.pop %v1084
  %v1086 = vadd.f32 %v1085, 1.0
  %v1087 = vrcp.pop %v1086
  %v1088 = vmul.f32 %v1086, %v1087
  %v1089 = vsub.f32 1.0, %v1088
  %v1090 = vmul.f32 %v1087, %v1089
  %v1091 = vadd.f32 %v1087, %v1090
  %vm1092 = vweird.f32 %v1086
  %vm1093 = vweird.f32 %v1087
  %vm1094 = vmor %vm1092, %vm1093
  %v1095 = vsel %vm1094, %v1087, %v1091
  %v1096 = vand.u32 2147483647, %v1086
  %vm1097 = vcmp.eq.f32.partialorder %v1096, 8.507059e+37
  %v1098 = vand.u32 %v1086, 2147483648
  %v1099 = vor.u32 1.1754944e-38, %v1098
  %v1100 = vsel %vm1097, %v1099, %v1095
  %v1101 = vmul.f32 1.0, %v1100
  %v1102 = vtanh.pop %v1081
  %1104 = vrot.lane.b32.xlu0 %v1082, 32
  %v1105 = vpop.permute.xlu0 %1104
  %v1107 = vmul.f32 %v1101, %v1105
  %1109 = vrot.lane.b32.xlu0 %v1102, 32
  %v1110 = vpop.permute.xlu0 %1109
  %v1112 = vmul.f32 %v1101, %v1110
  %1114 = vrot.lane.b32.xlu0 %v1112, 32
  %v1115 = vpop.permute.xlu0 %1114
  %v1117 = vadd.f32 %v1107, %v1115
  %v1118 = vtanh.pop %v1117
  %1120 = vrot.lane.b32.xlu0 %v1118, 32
  %v1121 = vpop.permute.xlu0 %1120
  %v1123 = vmul.f32 %v1101, %v1121
  %1125 = vrot.lane.b32.xlu0 %v1123, 64
  %v1126 = vpop.permute.xlu0 %1125
  %1128 = vst.msk [vmem:[#allocation2] sm:$0xff] %vm147, %v1126
  %1130 = vrot.lane.b32.xlu0 %v1117, 96
  %v1131 = vpop.permute.xlu0 %1130
  %1133 = vst.msk [vmem:[#allocation3] sm:$0xff] %vm147, %v1131
  %v1134 = vld [vmem:[#allocation2] sm:$0xff]
  %v1135 = vpack.c.bf16 %v1134, %v1134
  %v1136 = vld [vmem:[%s4] sm:$0xf]
  %v1137 = vld [vmem:[%s4 + $0x4] sm:$0xf]
  %v1138 = vld [vmem:[%s4 + $0x8] sm:$0xf]
  %v1139 = vld [vmem:[%s4 + $0xc] sm:$0xf]
  %v1140 = vld [vmem:[%s4 + $0x10] sm:$0xf]
  %v1141 = vld [vmem:[%s4 + $0x14] sm:$0xf]
  %v1142 = vld [vmem:[%s4 + $0x18] sm:$0xf]
  %v1143 = vld [vmem:[%s4 + $0x1c] sm:$0xf]
  %v1152 = vunpack.c.l.b16 %v1136
  %v1153 = vunpack.c.l.b16 %v1137
  %v1154 = vunpack.c.l.b16 %v1138
  %v1155 = vunpack.c.l.b16 %v1139
  %v1156 = vunpack.c.l.b16 %v1140
  %v1157 = vunpack.c.l.b16 %v1141
  %v1158 = vunpack.c.l.b16 %v1142
  %v1159 = vunpack.c.l.b16 %v1143
  %v1160 = vpack.c.b16 %v1153, %v1152
  %v1161 = vpack.c.b16 %v1155, %v1154
  %v1162 = vpack.c.b16 %v1157, %v1156
  %v1163 = vpack.c.b16 %v1159, %v1158
  %v1169 = vsel %vm251, %v1135, 0
  %1171 = vmatpush.bf16.msra.mxu0 0
  %1172 = vmatpush.bf16.msra.mxu0 0
  %1173 = vmatpush.bf16.msra.mxu0 0
  %1174 = vmatpush.bf16.msra.mxu0 0
  %1175 = vmatpush.bf16.msra.mxu0 %v1163
  %1176 = vmatpush.bf16.msra.mxu0 %v1162
  %1177 = vmatpush.bf16.msra.mxu0 %v1161
  %1178 = vmatpush.bf16.msra.mxu0 %v1160
  %1179 = vmatmul.bf16.gmra.mxu0 %v1169
  %v1180 = vpop.f32.mrf.mxu0
  %v1181 = vadd.f32 %v126, %v1180
  %v1182 = vpop.f32.mrf.mxu0
  %1183 = vdwg.mxu0
  %v1184 = vld [vmem:[#allocation3] sm:$0xff]
  %v1185 = vxor.u32 %v1181, 2147483648
  %v1186 = vmul.f32 %v1185, 1.442695
  %v1187 = vpow.pop %v1186
  %v1188 = vadd.f32 %v1187, 1.0
  %v1189 = vrcp.pop %v1188
  %v1190 = vmul.f32 %v1188, %v1189
  %v1191 = vsub.f32 1.0, %v1190
  %v1192 = vmul.f32 %v1189, %v1191
  %v1193 = vadd.f32 %v1189, %v1192
  %vm1194 = vweird.f32 %v1188
  %vm1195 = vweird.f32 %v1189
  %vm1196 = vmor %vm1194, %vm1195
  %v1197 = vsel %vm1196, %v1189, %v1193
  %v1198 = vand.u32 2147483647, %v1188
  %vm1199 = vcmp.eq.f32.partialorder %v1198, 8.507059e+37
  %v1200 = vand.u32 %v1188, 2147483648
  %v1201 = vor.u32 1.1754944e-38, %v1200
  %v1202 = vsel %vm1199, %v1201, %v1197
  %v1203 = vmul.f32 1.0, %v1202
  %v1204 = vtanh.pop %v1181
  %v1205 = vmul.f32 %v1203, %v1184
  %1207 = vrot.lane.b32.xlu0 %v1204, 32
  %v1208 = vpop.permute.xlu0 %1207
  %v1210 = vmul.f32 %v1203, %v1208
  %1212 = vrot.lane.b32.xlu0 %v1210, 32
  %v1213 = vpop.permute.xlu0 %1212
  %v1215 = vadd.f32 %v1205, %v1213
  %v1216 = vtanh.pop %v1215
  %1218 = vrot.lane.b32.xlu0 %v1216, 32
  %v1219 = vpop.permute.xlu0 %1218
  %v1221 = vmul.f32 %v1203, %v1219
  %1223 = vrot.lane.b32.xlu0 %v1221, 96
  %v1224 = vpop.permute.xlu0 %1223
  %1226 = vst.msk [vmem:[#allocation2] sm:$0xff] %vm310, %v1224
  %1227 = vst.msk [vmem:[#allocation3] sm:$0xff] %vm310, %v1215
  %s1228 = scalar_lea.vmem [#allocation4], 48
  %v1229 = vld [vmem:[%s1228] sm:$0xff]
  %v1230 = vld [vmem:[#allocation2] sm:$0xff]
  %v1231 = vpack.c.bf16 %v1230, %v1230
  %v1232 = vld [vmem:[%s3] sm:$0xf]
  %v1233 = vld [vmem:[%s3 + $0x4] sm:$0xf]
  %v1234 = vld [vmem:[%s3 + $0x8] sm:$0xf]
  %v1235 = vld [vmem:[%s3 + $0xc] sm:$0xf]
  %v1240 = vunpack.c.l.b16 %v1232
  %v1241 = vunpack.c.l.b16 %v1233
  %v1242 = vunpack.c.l.b16 %v1234
  %v1243 = vunpack.c.l.b16 %v1235
  %v1244 = vpack.c.b16 %v1241, %v1240
  %v1245 = vpack.c.b16 %v1243, %v1242
  %v1249 = vsel %vm147, %v1231, 0
  %1251 = vmatpush.bf16.msra.mxu0 0
  %1252 = vmatpush.bf16.msra.mxu0 0
  %1253 = vmatpush.bf16.msra.mxu0 0
  %1254 = vmatpush.bf16.msra.mxu0 0
  %1255 = vmatpush.bf16.msra.mxu0 0
  %1256 = vmatpush.bf16.msra.mxu0 0
  %1257 = vmatpush.bf16.msra.mxu0 %v1245
  %1258 = vmatpush.bf16.msra.mxu0 %v1244
  %1259 = vmatmul.bf16.gmra.mxu0 %v1249
  %v1260 = vpop.f32.mrf.mxu0
  %v1261 = vadd.f32 0.0, %v1260
  %v1262 = vpop.f32.mrf.mxu0
  %1263 = vdwg.mxu0
  %v1264 = vadd.f32 %v1229, %v1261
  %v1265 = vld [vmem:[#allocation3] sm:$0xff]
  %v1266 = vxor.u32 %v1264, 2147483648
  %v1267 = vmul.f32 %v1266, 1.442695
  %v1268 = vpow.pop %v1267
  %v1269 = vadd.f32 %v1268, 1.0
  %v1270 = vrcp.pop %v1269
  %v1271 = vmul.f32 %v1269, %v1270
  %v1272 = vsub.f32 1.0, %v1271
  %v1273 = vmul.f32 %v1270, %v1272
  %v1274 = vadd.f32 %v1270, %v1273
  %vm1275 = vweird.f32 %v1269
  %vm1276 = vweird.f32 %v1270
  %vm1277 = vmor %vm1275, %vm1276
  %v1278 = vsel %vm1277, %v1270, %v1274
  %v1279 = vand.u32 2147483647, %v1269
  %vm1280 = vcmp.eq.f32.partialorder %v1279, 8.507059e+37
  %v1281 = vand.u32 %v1269, 2147483648
  %v1282 = vor.u32 1.1754944e-38, %v1281
  %v1283 = vsel %vm1280, %v1282, %v1278
  %v1284 = vmul.f32 1.0, %v1283
  %v1285 = vtanh.pop %v1264
  %1287 = vrot.lane.b32.xlu0 %v1265, 32
  %v1288 = vpop.permute.xlu0 %1287
  %v1290 = vmul.f32 %v1284, %v1288
  %1292 = vrot.lane.b32.xlu0 %v1285, 32
  %v1293 = vpop.permute.xlu0 %1292
  %v1295 = vmul.f32 %v1284, %v1293
  %1297 = vrot.lane.b32.xlu0 %v1295, 32
  %v1298 = vpop.permute.xlu0 %1297
  %v1300 = vadd.f32 %v1290, %v1298
  %v1301 = vtanh.pop %v1300
  %1303 = vrot.lane.b32.xlu0 %v1301, 32
  %v1304 = vpop.permute.xlu0 %1303
  %v1306 = vmul.f32 %v1284, %v1304
  %1308 = vrot.lane.b32.xlu0 %v1306, 64
  %v1309 = vpop.permute.xlu0 %1308
  %1311 = vst.msk [vmem:[#allocation2] sm:$0xff] %vm147, %v1309
  %1313 = vrot.lane.b32.xlu0 %v1300, 96
  %v1314 = vpop.permute.xlu0 %1313
  %1316 = vst.msk [vmem:[#allocation3] sm:$0xff] %vm147, %v1314
  %v1317 = vld [vmem:[#allocation2] sm:$0xff]
  %v1318 = vpack.c.bf16 %v1317, %v1317
  %v1319 = vld [vmem:[%s4] sm:$0xf]
  %v1320 = vld [vmem:[%s4 + $0x4] sm:$0xf]
  %v1321 = vld [vmem:[%s4 + $0x8] sm:$0xf]
  %v1322 = vld [vmem:[%s4 + $0xc] sm:$0xf]
  %v1323 = vld [vmem:[%s4 + $0x10] sm:$0xf]
  %v1324 = vld [vmem:[%s4 + $0x14] sm:$0xf]
  %v1325 = vld [vmem:[%s4 + $0x18] sm:$0xf]
  %v1326 = vld [vmem:[%s4 + $0x1c] sm:$0xf]
  %v1335 = vunpack.c.l.b16 %v1319
  %v1336 = vunpack.c.l.b16 %v1320
  %v1337 = vunpack.c.l.b16 %v1321
  %v1338 = vunpack.c.l.b16 %v1322
  %v1339 = vunpack.c.l.b16 %v1323
  %v1340 = vunpack.c.l.b16 %v1324
  %v1341 = vunpack.c.l.b16 %v1325
  %v1342 = vunpack.c.l.b16 %v1326
  %v1343 = vpack.c.b16 %v1336, %v1335
  %v1344 = vpack.c.b16 %v1338, %v1337
  %v1345 = vpack.c.b16 %v1340, %v1339
  %v1346 = vpack.c.b16 %v1342, %v1341
  %v1352 = vsel %vm251, %v1318, 0
  %1354 = vmatpush.bf16.msra.mxu0 0
  %1355 = vmatpush.bf16.msra.mxu0 0
  %1356 = vmatpush.bf16.msra.mxu0 0
  %1357 = vmatpush.bf16.msra.mxu0 0
  %1358 = vmatpush.bf16.msra.mxu0 %v1346
  %1359 = vmatpush.bf16.msra.mxu0 %v1345
  %1360 = vmatpush.bf16.msra.mxu0 %v1344
  %1361 = vmatpush.bf16.msra.mxu0 %v1343
  %1362 = vmatmul.bf16.gmra.mxu0 %v1352
  %v1363 = vpop.f32.mrf.mxu0
  %v1364 = vadd.f32 %v126, %v1363
  %v1365 = vpop.f32.mrf.mxu0
  %1366 = vdwg.mxu0
  %v1367 = vld [vmem:[#allocation3] sm:$0xff]
  %v1368 = vxor.u32 %v1364, 2147483648
  %v1369 = vmul.f32 %v1368, 1.442695
  %v1370 = vpow.pop %v1369
  %v1371 = vadd.f32 %v1370, 1.0
  %v1372 = vrcp.pop %v1371
  %v1373 = vmul.f32 %v1371, %v1372
  %v1374 = vsub.f32 1.0, %v1373
  %v1375 = vmul.f32 %v1372, %v1374
  %v1376 = vadd.f32 %v1372, %v1375
  %vm1377 = vweird.f32 %v1371
  %vm1378 = vweird.f32 %v1372
  %vm1379 = vmor %vm1377, %vm1378
  %v1380 = vsel %vm1379, %v1372, %v1376
  %v1381 = vand.u32 2147483647, %v1371
  %vm1382 = vcmp.eq.f32.partialorder %v1381, 8.507059e+37
  %v1383 = vand.u32 %v1371, 2147483648
  %v1384 = vor.u32 1.1754944e-38, %v1383
  %v1385 = vsel %vm1382, %v1384, %v1380
  %v1386 = vmul.f32 1.0, %v1385
  %v1387 = vtanh.pop %v1364
  %v1388 = vmul.f32 %v1386, %v1367
  %1390 = vrot.lane.b32.xlu0 %v1387, 32
  %v1391 = vpop.permute.xlu0 %1390
  %v1393 = vmul.f32 %v1386, %v1391
  %1395 = vrot.lane.b32.xlu0 %v1393, 32
  %v1396 = vpop.permute.xlu0 %1395
  %v1398 = vadd.f32 %v1388, %v1396
  %v1399 = vtanh.pop %v1398
  %1401 = vrot.lane.b32.xlu0 %v1399, 32
  %v1402 = vpop.permute.xlu0 %1401
  %v1404 = vmul.f32 %v1386, %v1402
  %1406 = vrot.lane.b32.xlu0 %v1404, 96
  %v1407 = vpop.permute.xlu0 %1406
  %1409 = vst.msk [vmem:[#allocation2] sm:$0xff] %vm310, %v1407
  %1410 = vst.msk [vmem:[#allocation3] sm:$0xff] %vm310, %v1398
  %s1411 = scalar_lea.vmem [#allocation4], 56
  %v1412 = vld [vmem:[%s1411] sm:$0xff]
  %v1413 = vld [vmem:[#allocation2] sm:$0xff]
  %v1414 = vpack.c.bf16 %v1413, %v1413
  %v1415 = vld [vmem:[%s3] sm:$0xf]
  %v1416 = vld [vmem:[%s3 + $0x4] sm:$0xf]
  %v1417 = vld [vmem:[%s3 + $0x8] sm:$0xf]
  %v1418 = vld [vmem:[%s3 + $0xc] sm:$0xf]
  %v1423 = vunpack.c.l.b16 %v1415
  %v1424 = vunpack.c.l.b16 %v1416
  %v1425 = vunpack.c.l.b16 %v1417
  %v1426 = vunpack.c.l.b16 %v1418
  %v1427 = vpack.c.b16 %v1424, %v1423
  %v1428 = vpack.c.b16 %v1426, %v1425
  %v1432 = vsel %vm147, %v1414, 0
  %1434 = vmatpush.bf16.msra.mxu0 0
  %1435 = vmatpush.bf16.msra.mxu0 0
  %1436 = vmatpush.bf16.msra.mxu0 0
  %1437 = vmatpush.bf16.msra.mxu0 0
  %1438 = vmatpush.bf16.msra.mxu0 0
  %1439 = vmatpush.bf16.msra.mxu0 0
  %1440 = vmatpush.bf16.msra.mxu0 %v1428
  %1441 = vmatpush.bf16.msra.mxu0 %v1427
  %1442 = vmatmul.bf16.gmra.mxu0 %v1432
  %v1443 = vpop.f32.mrf.mxu0
  %v1444 = vadd.f32 0.0, %v1443
  %v1445 = vpop.f32.mrf.mxu0
  %1446 = vdwg.mxu0
  %v1447 = vadd.f32 %v1412, %v1444
  %v1448 = vld [vmem:[#allocation3] sm:$0xff]
  %v1449 = vxor.u32 %v1447, 2147483648
  %v1450 = vmul.f32 %v1449, 1.442695
  %v1451 = vpow.pop %v1450
  %v1452 = vadd.f32 %v1451, 1.0
  %v1453 = vrcp.pop %v1452
  %v1454 = vmul.f32 %v1452, %v1453
  %v1455 = vsub.f32 1.0, %v1454
  %v1456 = vmul.f32 %v1453, %v1455
  %v1457 = vadd.f32 %v1453, %v1456
  %vm1458 = vweird.f32 %v1452
  %vm1459 = vweird.f32 %v1453
  %vm1460 = vmor %vm1458, %vm1459
  %v1461 = vsel %vm1460, %v1453, %v1457
  %v1462 = vand.u32 2147483647, %v1452
  %vm1463 = vcmp.eq.f32.partialorder %v1462, 8.507059e+37
  %v1464 = vand.u32 %v1452, 2147483648
  %v1465 = vor.u32 1.1754944e-38, %v1464
  %v1466 = vsel %vm1463, %v1465, %v1461
  %v1467 = vmul.f32 1.0, %v1466
  %v1468 = vtanh.pop %v1447
  %1470 = vrot.lane.b32.xlu0 %v1448, 32
  %v1471 = vpop.permute.xlu0 %1470
  %v1473 = vmul.f32 %v1467, %v1471
  %1475 = vrot.lane.b32.xlu0 %v1468, 32
  %v1476 = vpop.permute.xlu0 %1475
  %v1478 = vmul.f32 %v1467, %v1476
  %1480 = vrot.lane.b32.xlu0 %v1478, 32
  %v1481 = vpop.permute.xlu0 %1480
  %v1483 = vadd.f32 %v1473, %v1481
  %v1484 = vtanh.pop %v1483
  %1486 = vrot.lane.b32.xlu0 %v1484, 32
  %v1487 = vpop.permute.xlu0 %1486
  %v1489 = vmul.f32 %v1467, %v1487
  %1491 = vrot.lane.b32.xlu0 %v1489, 64
  %v1492 = vpop.permute.xlu0 %1491
  %1494 = vst.msk [vmem:[#allocation2] sm:$0xff] %vm147, %v1492
  %1496 = vrot.lane.b32.xlu0 %v1483, 96
  %v1497 = vpop.permute.xlu0 %1496
  %1499 = vst.msk [vmem:[#allocation3] sm:$0xff] %vm147, %v1497
  %v1500 = vld [vmem:[#allocation2] sm:$0xff]
  %v1501 = vpack.c.bf16 %v1500, %v1500
  %v1502 = vld [vmem:[%s4] sm:$0xf]
  %v1503 = vld [vmem:[%s4 + $0x4] sm:$0xf]
  %v1504 = vld [vmem:[%s4 + $0x8] sm:$0xf]
  %v1505 = vld [vmem:[%s4 + $0xc] sm:$0xf]
  %v1506 = vld [vmem:[%s4 + $0x10] sm:$0xf]
  %v1507 = vld [vmem:[%s4 + $0x14] sm:$0xf]
  %v1508 = vld [vmem:[%s4 + $0x18] sm:$0xf]
  %v1509 = vld [vmem:[%s4 + $0x1c] sm:$0xf]
  %v1518 = vunpack.c.l.b16 %v1502
  %v1519 = vunpack.c.l.b16 %v1503
  %v1520 = vunpack.c.l.b16 %v1504
  %v1521 = vunpack.c.l.b16 %v1505
  %v1522 = vunpack.c.l.b16 %v1506
  %v1523 = vunpack.c.l.b16 %v1507
  %v1524 = vunpack.c.l.b16 %v1508
  %v1525 = vunpack.c.l.b16 %v1509
  %v1526 = vpack.c.b16 %v1519, %v1518
  %v1527 = vpack.c.b16 %v1521, %v1520
  %v1528 = vpack.c.b16 %v1523, %v1522
  %v1529 = vpack.c.b16 %v1525, %v1524
  %v1535 = vsel %vm251, %v1501, 0
  %1537 = vmatpush.bf16.msra.mxu0 0
  %1538 = vmatpush.bf16.msra.mxu0 0
  %1539 = vmatpush.bf16.msra.mxu0 0
  %1540 = vmatpush.bf16.msra.mxu0 0
  %1541 = vmatpush.bf16.msra.mxu0 %v1529
  %1542 = vmatpush.bf16.msra.mxu0 %v1528
  %1543 = vmatpush.bf16.msra.mxu0 %v1527
  %1544 = vmatpush.bf16.msra.mxu0 %v1526
  %1545 = vmatmul.bf16.gmra.mxu0 %v1535
  %v1546 = vpop.f32.mrf.mxu0
  %v1547 = vadd.f32 %v126, %v1546
  %v1548 = vpop.f32.mrf.mxu0
  %1549 = vdwg.mxu0
  %v1550 = vld [vmem:[#allocation3] sm:$0xff]
  %v1551 = vxor.u32 %v1547, 2147483648
  %v1552 = vmul.f32 %v1551, 1.442695
  %v1553 = vpow.pop %v1552
  %v1554 = vadd.f32 %v1553, 1.0
  %v1555 = vrcp.pop %v1554
  %v1556 = vmul.f32 %v1554, %v1555
  %v1557 = vsub.f32 1.0, %v1556
  %v1558 = vmul.f32 %v1555, %v1557
  %v1559 = vadd.f32 %v1555, %v1558
  %vm1560 = vweird.f32 %v1554
  %vm1561 = vweird.f32 %v1555
  %vm1562 = vmor %vm1560, %vm1561
  %v1563 = vsel %vm1562, %v1555, %v1559
  %v1564 = vand.u32 2147483647, %v1554
  %vm1565 = vcmp.eq.f32.partialorder %v1564, 8.507059e+37
  %v1566 = vand.u32 %v1554, 2147483648
  %v1567 = vor.u32 1.1754944e-38, %v1566
  %v1568 = vsel %vm1565, %v1567, %v1563
  %v1569 = vmul.f32 1.0, %v1568
  %v1570 = vtanh.pop %v1547
  %v1571 = vmul.f32 %v1569, %v1550
  %1573 = vrot.lane.b32.xlu0 %v1570, 32
  %v1574 = vpop.permute.xlu0 %1573
  %v1576 = vmul.f32 %v1569, %v1574
  %1578 = vrot.lane.b32.xlu0 %v1576, 32
  %v1579 = vpop.permute.xlu0 %1578
  %v1581 = vadd.f32 %v1571, %v1579
  %v1582 = vtanh.pop %v1581
  %1584 = vrot.lane.b32.xlu0 %v1582, 32
  %v1585 = vpop.permute.xlu0 %1584
  %v1587 = vmul.f32 %v1569, %v1585
  %1589 = vrot.lane.b32.xlu0 %v1587, 96
  %v1590 = vpop.permute.xlu0 %1589
  %1592 = vst.msk [vmem:[#allocation2] sm:$0xff] %vm310, %v1590
  %1593 = vst.msk [vmem:[#allocation3] sm:$0xff] %vm310, %v1581
  // Predicated region
  $region38: #{lstm_forward.1} parent=0 // pred_check
    %p1594 = pneg %p30
  $region39: #{lstm_forward.1} parent=0 // pred_check_branch
    %1596 = sbr.rel (%p1594) target = $region41
  $region40: #{lstm_forward.1} parent=0 // pred_region
    %v1597 = vld [vmem:[#allocation2] sm:$0xff]
    %v1598 = vpack.c.bf16 %v1597, %v1597
    %v1599 = vld [vmem:[%s6] sm:$0xf]
    %v1600 = vld [vmem:[%s6 + $0x4] sm:$0xf]
    %v1601 = vld [vmem:[%s6 + $0x8] sm:$0xf]
    %v1602 = vld [vmem:[%s6 + $0xc] sm:$0xf]
    %v1603 = vld [vmem:[%s7] sm:$0x1]
    %v1605 = vperm.slane %v1603, 0
    %1608 = vrot.lane.b32.xlu0 %v1598, 96
    %v1609 = vpop.permute.xlu0 %1608
    %v1614 = vunpack.c.l.b16 %v1599
    %v1615 = vunpack.c.l.b16 %v1600
    %v1616 = vunpack.c.l.b16 %v1601
    %v1617 = vunpack.c.l.b16 %v1602
    %v1618 = vpack.c.b16 %v1615, %v1614
    %v1619 = vpack.c.b16 %v1617, %v1616
    %v1623 = vsel %vm147, %v1609, 0
    %1625 = vmatpush.bf16.msra.mxu0 0
    %1626 = vmatpush.bf16.msra.mxu0 0
    %1627 = vmatpush.bf16.msra.mxu0 0
    %1628 = vmatpush.bf16.msra.mxu0 0
    %1629 = vmatpush.bf16.msra.mxu0 0
    %1630 = vmatpush.bf16.msra.mxu0 0
    %1631 = vmatpush.bf16.msra.mxu0 %v1619
    %1632 = vmatpush.bf16.msra.mxu0 %v1618
    %1633 = vmatmul.bf16.gmra.mxu0 %v1623
    %v1634 = vpop.f32.mrf.mxu0
    %v1635 = vadd.f32 %v1605, %v1634
    %v1636 = vpop.f32.mrf.mxu0
    %1637 = vdwg.mxu0
    %1638 = vst.msk [vmem:[%s8] sm:$0xff] %vm70, %v1635
  $region41: #{lstm_forward.1} parent=0 // pred_fallthru
    _
  // Predicated region
  $region42: #{lstm_forward.1} parent=0 // pred_check
    _
  $region43: #{lstm_forward.1} parent=0 // pred_check_branch
    %1640 = sbr.rel (0) target = $region45
  $region44: #{lstm_forward.1} parent=0 // pred_region
    _
  $region45: #{lstm_forward.1} parent=0 // pred_fallthru
    _
  // Predicated region
  $region46: #{lstm_forward.1} parent=0 // pred_check
    _
  $region47: #{lstm_forward.1} parent=0 // pred_check_branch
    %1642 = sbr.rel (0) target = $region49
  $region48: #{lstm_forward.1} parent=0 // pred_region
    _
  $region49: #{lstm_forward.1} parent=0 // pred_fallthru
    _

</llo_original>
